<compile_context>
chip_gen: v7x
topology: tpu7x:2x2x1
jax: 0.10.0
libtpu: 0.0.40
codegen_flags: <defaults>
</compile_context>

<pallas_src>
import functools

import jax
import jax.numpy as jnp
from jax.experimental import pallas as pl
from jax.experimental.pallas import tpu as pltpu


# ---------------------------------------------------------------------------
# Wrapper-side constant construction (tiny; static-shape parts constant-fold).
# ---------------------------------------------------------------------------
def _interp_matrix(n_out, n_in):
    """Interpolation matrix matching nn.Upsample(mode='bilinear', align_corners=True)."""
    if n_out == 1:
        return jnp.zeros((1, n_in), jnp.float32).at[0, 0].set(1.0)
    src = jnp.arange(n_out, dtype=jnp.float32) * (n_in - 1) / (n_out - 1)
    i0 = jnp.clip(jnp.floor(src).astype(jnp.int32), 0, n_in - 1)
    i1 = jnp.clip(i0 + 1, 0, n_in - 1)
    frac = src - i0.astype(jnp.float32)
    rows = jnp.arange(n_out)
    m = jnp.zeros((n_out, n_in), jnp.float32)
    m = m.at[rows, i0].add(1.0 - frac)
    m = m.at[rows, i1].add(frac)
    return m


def _banded_taps(w_hwio, width):
    """Fold the 3 dx taps of a 3x3 'same' conv into one banded matrix per dy.

    Returns (3, width*Cin, width*Cout) with
        B[dy, (x+dx-1)*Cin + ci, x*Cout + co] = w[dy, dx, ci, co];
    taps whose source column x+dx-1 falls outside [0, width) are dropped, which is
    exactly zero padding along W (so no padded input is ever materialized).
    """
    cin, cout = w_hwio.shape[2], w_hwio.shape[3]
    mats = []
    for dy in range(3):
        m = jnp.zeros((width * cin, width * cout), jnp.float32)
        for dx in range(3):
            shift = jnp.eye(width, k=1 - dx, dtype=jnp.float32)  # shift[x+dx-1, x] = 1
            m = m + jnp.kron(shift, w_hwio[dy, dx])
        mats.append(m)
    return jnp.stack(mats)


# ---------------------------------------------------------------------------
# Fused kernel: upsample + pad + (folded) concat + conv/BN/ReLU x2, all in VMEM.
# ---------------------------------------------------------------------------
def _up_fused_kernel(x1_ref, x2_ref, uhp_ref, k1_ref, k2_ref, k3_ref,
                     p1_ref, g1_ref, b1_ref, p2_ref, g2_ref, b2_ref,
                     o_ref, up_s, x2p_s, mid_s, *, inv_count):
    f32 = jnp.float32
    N = x1_ref.shape[0]
    _, H2, L2 = x2_ref.shape
    Hp = H2 + 2
    Lmid = k1_ref.shape[2]
    Lout = k3_ref.shape[2]

    # 1) bilinear H-upsample of x1.  uhp already contains the F.pad row offset and
    #    the conv halo (zero border rows); the W-upsample / W-pad matrix has been
    #    folded into the x1-path tap matrices (k1).
    for n in range(N):
        up_s[n:n + 1] = jnp.dot(uhp_ref[...], x1_ref[n],
                                preferred_element_type=f32)[None]

    # 2) x2 staged with a zero H halo (its W halo is encoded in the banded taps).
    x2p_s[:, 0:1, :] = jnp.zeros((N, 1, L2), f32)
    x2p_s[:, Hp - 1:Hp, :] = jnp.zeros((N, 1, L2), f32)
    x2p_s[:, 1:H2 + 1, :] = x2_ref[...]

    def conv_rows(src_s, taps_ref, n, lout):
        # 3 per-dy banded matmuls == 3x3 'same' conv for image n (bf16 MXU, f32 acc)
        acc = jnp.zeros((H2, lout), f32)
        for dy in range(3):
            lhs = src_s[n, dy:dy + H2, :].astype(jnp.bfloat16)
            acc = acc + jnp.dot(lhs, taps_ref[dy], preferred_element_type=f32)
        return acc

    def bn_relu(xs, p_ref, g_ref, b_ref):
        # training-mode BatchNorm2d (biased batch variance, eps=1e-5) + ReLU.
        # p_ref is the 0/1 "same-channel" pooling matrix: row-sums @ p both reduces
        # over W and broadcasts the per-channel result back over the flattened lanes,
        # so the lane-dense (W, C) layout is never broken.
        ll = xs[0].shape[1]
        rs = jnp.zeros((1, ll), f32)
        for x in xs:
            rs = rs + jnp.sum(x, axis=0, keepdims=True)
        mean = jnp.dot(rs, p_ref[...], preferred_element_type=f32) * inv_count
        rs2 = jnp.zeros((1, ll), f32)
        for x in xs:                      # two-pass (centered) variance
            d = x - mean
            rs2 = rs2 + jnp.sum(d * d, axis=0, keepdims=True)
        var = jnp.dot(rs2, p_ref[...], preferred_element_type=f32) * inv_count
        scale = jax.lax.rsqrt(var + 1e-5) * g_ref[...]
        return [jnp.maximum((x - mean) * scale + b_ref[...], 0.0) for x in xs]

    # 3) conv1: concat folded away -> x2-channel taps + upsampled-x1-channel taps.
    h = [conv_rows(x2p_s, k2_ref, n, Lmid) + conv_rows(up_s, k1_ref, n, Lmid)
         for n in range(N)]
    h = bn_relu(h, p1_ref, g1_ref, b1_ref)

    # 4) stage the BN1/ReLU result with a zero H halo for conv2.
    mid_s[:, 0:1, :] = jnp.zeros((N, 1, Lmid), f32)
    mid_s[:, Hp - 1:Hp, :] = jnp.zeros((N, 1, Lmid), f32)
    for n in range(N):
        mid_s[n:n + 1, 1:H2 + 1, :] = h[n][None]

    # 5) conv2 + BN2 + ReLU.
    h = [conv_rows(mid_s, k3_ref, n, Lout) for n in range(N)]
    h = bn_relu(h, p2_ref, g2_ref, b2_ref)

    for n in range(N):
        o_ref[n:n + 1] = h[n][None]


# ---------------------------------------------------------------------------
# Up.forward
# ---------------------------------------------------------------------------
def up_forward(x1_nchw, x2_nchw, params, scale_factor=2):
    N, C1, H1, W1 = x1_nchw.shape
    _, C2, H2, W2 = x2_nchw.shape
    w1 = params["w1"].astype(jnp.float32)      # (3, 3, C2 + C1, Cmid)   HWIO
    w2 = params["w2"].astype(jnp.float32)      # (3, 3, Cmid, Cout)
    Cmid, Cout = w1.shape[-1], w2.shape[-1]

    Ho, Wo = H1 * scale_factor, W1 * scale_factor
    diffY, diffX = H2 - Ho, W2 - Wo
    py0, px0 = diffY // 2, diffX // 2

    # NCHW -> NHWC with (W, C) flattened into one lane-dense trailing dim.
    x1f = jnp.transpose(x1_nchw, (0, 2, 3, 1)).reshape(N, H1, W1 * C1).astype(jnp.float32)
    x2f = jnp.transpose(x2_nchw, (0, 2, 3, 1)).reshape(N, H2, W2 * C2).astype(jnp.float32)

    # Bilinear interpolation matrices; F.pad and conv-1's H halo folded in.
    uh = _interp_matrix(Ho, H1)                                      # (Ho, H1)
    uhp = jnp.zeros((H2 + 2, H1), jnp.float32).at[1 + py0:1 + py0 + Ho, :].set(uh)
    uw = _interp_matrix(Wo, W1)                                      # (Wo, W1)
    mw = jnp.kron(uw.T, jnp.eye(C1, dtype=jnp.float32))              # (W1*C1, Wo*C1)
    mwp = jnp.pad(mw, ((0, 0), (px0 * C1, (diffX - px0) * C1)))      # (W1*C1, W2*C1)

    # Banded per-dy tap matrices.  conv1 splits over the channel concat:
    # w1[:, :, :C2] acts on x2, w1[:, :, C2:] acts on up(x1); the W-upsample/pad
    # matrix is folded straight into the x1-path taps.
    k2 = _banded_taps(w1[:, :, :C2, :], W2)                          # (3, W2*C2,   W2*Cmid)
    k1 = jnp.einsum("ij,djk->dik", mwp,
                    _banded_taps(w1[:, :, C2:, :], W2))              # (3, W1*C1,   W2*Cmid)
    k3 = _banded_taps(w2, W2)                                        # (3, W2*Cmid, W2*Cout)
    k1 = k1.astype(jnp.bfloat16)                                     # bf16 MXU operands,
    k2 = k2.astype(jnp.bfloat16)                                     # f32 accumulation
    k3 = k3.astype(jnp.bfloat16)

    # BatchNorm helpers: "same-channel" pooling matrices + lane-tiled gamma/beta.
    p1 = jnp.kron(jnp.ones((W2, W2), jnp.float32), jnp.eye(Cmid, dtype=jnp.float32))
    p2 = jnp.kron(jnp.ones((W2, W2), jnp.float32), jnp.eye(Cout, dtype=jnp.float32))
    g1 = jnp.tile(params["g1"].astype(jnp.float32), W2).reshape(1, W2 * Cmid)
    b1 = jnp.tile(params["b1"].astype(jnp.float32), W2).reshape(1, W2 * Cmid)
    g2 = jnp.tile(params["g2"].astype(jnp.float32), W2).reshape(1, W2 * Cout)
    b2 = jnp.tile(params["b2"].astype(jnp.float32), W2).reshape(1, W2 * Cout)

    inputs = (x1f, x2f, uhp, k1, k2, k3, p1, g1, b1, p2, g2, b2)

    def _full(a):
        return pl.BlockSpec(a.shape, lambda i, nd=a.ndim: (0,) * nd)

    out = pl.pallas_call(
        functools.partial(_up_fused_kernel, inv_count=1.0 / float(N * H2 * W2)),
        out_shape=jax.ShapeDtypeStruct((N, H2, W2 * Cout), jnp.float32),
        grid=(1,),
        in_specs=[_full(a) for a in inputs],
        out_specs=pl.BlockSpec((N, H2, W2 * Cout), lambda i: (0, 0, 0)),
        scratch_shapes=[
            pltpu.VMEM((N, H2 + 2, W1 * C1), jnp.float32),    # H-upsampled x1 (pre-W)
            pltpu.VMEM((N, H2 + 2, W2 * C2), jnp.float32),    # H-haloed x2
            pltpu.VMEM((N, H2 + 2, W2 * Cmid), jnp.float32),  # H-haloed BN1/ReLU output
        ],
        compiler_params=pltpu.CompilerParams(
            dimension_semantics=("arbitrary",),
            vmem_limit_bytes=32 * 1024 * 1024),
    )(*inputs)

    out = out.reshape(N, H2, W2, Cout)
    return jnp.transpose(out, (0, 3, 1, 2))      # back to NCHW


def init_params(key, in_channels, out_channels):
    # Up(in_channels, out_channels, bilinear=True): DoubleConv(in, out, mid=in // 2)
    mid = in_channels // 2
    k1, k2 = jax.random.split(key)
    w1 = jax.random.normal(k1, (3, 3, in_channels, mid), jnp.float32) * 0.1   # HWIO
    w2 = jax.random.normal(k2, (3, 3, mid, out_channels), jnp.float32) * 0.1
    return dict(
        w1=w1, g1=jnp.ones((mid,), jnp.float32), b1=jnp.zeros((mid,), jnp.float32),
        w2=w2, g2=jnp.ones((out_channels,), jnp.float32),
        b2=jnp.zeros((out_channels,), jnp.float32),
    )


if __name__ == "__main__":
    key = jax.random.PRNGKey(0)
    kx1, kx2, kp = jax.random.split(key, 3)

    # Up(in_channels=8, out_channels=4, bilinear=True, scale_factor=2)
    # x1: coarse features (NCHW), x2: skip connection (NCHW); cat -> 8 channels.
    x1 = jax.random.normal(kx1, (2, 4, 8, 8), jnp.float32)
    x2 = jax.random.normal(kx2, (2, 4, 16, 16), jnp.float32)
    params = init_params(kp, in_channels=8, out_channels=4)

    out = jax.jit(up_forward)(x1, x2, params)
    out = jax.block_until_ready(out)
    assert out.shape == (2, 4, 16, 16), out.shape
    assert bool(jnp.all(jnp.isfinite(out)))
    print("KERNEL_OK")
</pallas_src>

<mosaic_0001>
module attributes {stable_mosaic.version = 11 : i64} {
  func.func private @main(%arg0: i32) attributes {dimension_semantics = [#tpu.dimension_semantics<core_parallel>], iteration_bounds = array<i64: 2>, tpu.core_type = #tpu.core_type<sc_scalar_subcore>, window_params = []} {
    return
  }
}

module attributes {stable_mosaic.version = 11 : i64} {
  func.func private @main(%arg0: i32) attributes {dimension_semantics = [#tpu.dimension_semantics<core_parallel>], iteration_bounds = array<i64: 2>, tpu.core_type = #tpu.core_type<sc_scalar_subcore>, window_params = []} {
    return
  }
}

module attributes {stable_mosaic.version = 11 : i64} {
  func.func @_up_fused_kernel(%arg0: i32, %arg1: memref<2x8x32xf32, #tpu.memory_space<vmem>>, %arg2: memref<2x16x64xf32, #tpu.memory_space<vmem>>, %arg3: memref<18x8xf32, #tpu.memory_space<vmem>>, %arg4: memref<3x32x64xbf16, #tpu.memory_space<vmem>>, %arg5: memref<3x64x64xbf16, #tpu.memory_space<vmem>>, %arg6: memref<3x64x64xbf16, #tpu.memory_space<vmem>>, %arg7: memref<64x64xf32, #tpu.memory_space<vmem>>, %arg8: memref<1x64xf32, #tpu.memory_space<vmem>>, %arg9: memref<1x64xf32, #tpu.memory_space<vmem>>, %arg10: memref<64x64xf32, #tpu.memory_space<vmem>>, %arg11: memref<1x64xf32, #tpu.memory_space<vmem>>, %arg12: memref<1x64xf32, #tpu.memory_space<vmem>>, %arg13: memref<2x16x64xf32, #tpu.memory_space<vmem>>, %arg14: memref<2x18x32xf32, #tpu.memory_space<vmem>>, %arg15: memref<2x18x64xf32, #tpu.memory_space<vmem>>, %arg16: memref<2x18x64xf32, #tpu.memory_space<vmem>>) attributes {dimension_semantics = [#tpu.dimension_semantics<arbitrary>], iteration_bounds = array<i64: 1>, scalar_prefetch = 0 : i64, scratch_operands = 3 : i64, tpu.core_type = #tpu.core_type<tc>, window_params = [{pipeline_mode = #tpu.pipeline_mode<synchronous>, transform_indices = @transform_0, window_bounds = array<i64: 2, 8, 32>}, {pipeline_mode = #tpu.pipeline_mode<synchronous>, transform_indices = @transform_1, window_bounds = array<i64: 2, 16, 64>}, {pipeline_mode = #tpu.pipeline_mode<synchronous>, transform_indices = @transform_2, window_bounds = array<i64: 18, 8>}, {pipeline_mode = #tpu.pipeline_mode<synchronous>, transform_indices = @transform_3, window_bounds = array<i64: 3, 32, 64>}, {pipeline_mode = #tpu.pipeline_mode<synchronous>, transform_indices = @transform_4, window_bounds = array<i64: 3, 64, 64>}, {pipeline_mode = #tpu.pipeline_mode<synchronous>, transform_indices = @transform_5, window_bounds = array<i64: 3, 64, 64>}, {pipeline_mode = #tpu.pipeline_mode<synchronous>, transform_indices = @transform_6, window_bounds = array<i64: 64, 64>}, {pipeline_mode = #tpu.pipeline_mode<synchronous>, transform_indices = @transform_7, window_bounds = array<i64: 1, 64>}, {pipeline_mode = #tpu.pipeline_mode<synchronous>, transform_indices = @transform_8, window_bounds = array<i64: 1, 64>}, {pipeline_mode = #tpu.pipeline_mode<synchronous>, transform_indices = @transform_9, window_bounds = array<i64: 64, 64>}, {pipeline_mode = #tpu.pipeline_mode<synchronous>, transform_indices = @transform_10, window_bounds = array<i64: 1, 64>}, {pipeline_mode = #tpu.pipeline_mode<synchronous>, transform_indices = @transform_11, window_bounds = array<i64: 1, 64>}, {pipeline_mode = #tpu.pipeline_mode<synchronous>, transform_indices = @transform_12, window_bounds = array<i64: 2, 16, 64>}]} {
    %c0 = arith.constant 0 : index
    %c0_0 = arith.constant 0 : index
    %0 = vector.load %arg3[%c0, %c0_0] : memref<18x8xf32, #tpu.memory_space<vmem>>, vector<18x8xf32>
    %c0_1 = arith.constant 0 : index
    %c0_2 = arith.constant 0 : index
    %c0_3 = arith.constant 0 : index
    %1 = vector.load %arg1[%c0_1, %c0_2, %c0_3] : memref<2x8x32xf32, #tpu.memory_space<vmem>>, vector<1x8x32xf32>
    %2 = vector.shape_cast %1 : vector<1x8x32xf32> to vector<8x32xf32>
    %cst = arith.constant dense<0.000000e+00> : vector<18x32xf32>
    %3 = tpu.matmul %0, %2, %cst {dimension_numbers = #tpu.dot_dimension_numbers<[1], [0], [0], [1], [0, 0, 1, 1], [], []>} : vector<18x8xf32>, vector<8x32xf32>, vector<18x32xf32> -> vector<18x32xf32>
    %4 = vector.shape_cast %3 : vector<18x32xf32> to vector<1x18x32xf32>
    %c0_4 = arith.constant 0 : index
    %c0_5 = arith.constant 0 : index
    %c0_6 = arith.constant 0 : index
    %5 = vector.load %arg14[%c0_4, %c0_5, %c0_6] : memref<2x18x32xf32, #tpu.memory_space<vmem>>, vector<1x18x32xf32>
    tpu.vector_store %arg14[%c0_4, %c0_5, %c0_6], %4 {strides = array<i32>} : memref<2x18x32xf32, #tpu.memory_space<vmem>>, vector<1x18x32xf32>,
    %c0_7 = arith.constant 0 : index
    %c0_8 = arith.constant 0 : index
    %6 = vector.load %arg3[%c0_7, %c0_8] : memref<18x8xf32, #tpu.memory_space<vmem>>, vector<18x8xf32>
    %c1 = arith.constant 1 : index
    %c0_9 = arith.constant 0 : index
    %c0_10 = arith.constant 0 : index
    %7 = vector.load %arg1[%c1, %c0_9, %c0_10] : memref<2x8x32xf32, #tpu.memory_space<vmem>>, vector<1x8x32xf32>
    %8 = vector.shape_cast %7 : vector<1x8x32xf32> to vector<8x32xf32>
    %cst_11 = arith.constant dense<0.000000e+00> : vector<18x32xf32>
    %9 = tpu.matmul %6, %8, %cst_11 {dimension_numbers = #tpu.dot_dimension_numbers<[1], [0], [0], [1], [0, 0, 1, 1], [], []>} : vector<18x8xf32>, vector<8x32xf32>, vector<18x32xf32> -> vector<18x32xf32>
    %10 = vector.shape_cast %9 : vector<18x32xf32> to vector<1x18x32xf32>
    %c1_12 = arith.constant 1 : index
    %c0_13 = arith.constant 0 : index
    %c0_14 = arith.constant 0 : index
    %11 = vector.load %arg14[%c1_12, %c0_13, %c0_14] : memref<2x18x32xf32, #tpu.memory_space<vmem>>, vector<1x18x32xf32>
    tpu.vector_store %arg14[%c1_12, %c0_13, %c0_14], %10 {strides = array<i32>} : memref<2x18x32xf32, #tpu.memory_space<vmem>>, vector<1x18x32xf32>,
    %cst_15 = arith.constant 0.000000e+00 : f32
    %12 = vector.broadcast %cst_15 : f32 to vector<2x1x64xf32>
    %c0_16 = arith.constant 0 : index
    %c0_17 = arith.constant 0 : index
    %c0_18 = arith.constant 0 : index
    %13 = vector.load %arg15[%c0_16, %c0_17, %c0_18] : memref<2x18x64xf32, #tpu.memory_space<vmem>>, vector<2x1x64xf32>
    tpu.vector_store %arg15[%c0_16, %c0_17, %c0_18], %12 {strides = array<i32>} : memref<2x18x64xf32, #tpu.memory_space<vmem>>, vector<2x1x64xf32>,
    %cst_19 = arith.constant 0.000000e+00 : f32
    %14 = vector.broadcast %cst_19 : f32 to vector<2x1x64xf32>
    %c0_20 = arith.constant 0 : index
    %c17 = arith.constant 17 : index
    %c0_21 = arith.constant 0 : index
    %15 = vector.load %arg15[%c0_20, %c17, %c0_21] : memref<2x18x64xf32, #tpu.memory_space<vmem>>, vector<2x1x64xf32>
    tpu.vector_store %arg15[%c0_20, %c17, %c0_21], %14 {strides = array<i32>} : memref<2x18x64xf32, #tpu.memory_space<vmem>>, vector<2x1x64xf32>,
    %c0_22 = arith.constant 0 : index
    %c0_23 = arith.constant 0 : index
    %c0_24 = arith.constant 0 : index
    %16 = vector.load %arg2[%c0_22, %c0_23, %c0_24] : memref<2x16x64xf32, #tpu.memory_space<vmem>>, vector<2x16x64xf32>
    %c0_25 = arith.constant 0 : index
    %c1_26 = arith.constant 1 : index
    %c0_27 = arith.constant 0 : index
    %17 = vector.load %arg15[%c0_25, %c1_26, %c0_27] : memref<2x18x64xf32, #tpu.memory_space<vmem>>, vector<2x16x64xf32>
    tpu.vector_store %arg15[%c0_25, %c1_26, %c0_27], %16 {strides = array<i32>} : memref<2x18x64xf32, #tpu.memory_space<vmem>>, vector<2x16x64xf32>,
    %cst_28 = arith.constant 0.000000e+00 : f32
    %18 = vector.broadcast %cst_28 : f32 to vector<16x64xf32>
    %c0_29 = arith.constant 0 : index
    %c0_30 = arith.constant 0 : index
    %c0_31 = arith.constant 0 : index
    %19 = vector.load %arg15[%c0_29, %c0_30, %c0_31] : memref<2x18x64xf32, #tpu.memory_space<vmem>>, vector<1x16x64xf32>
    %20 = vector.shape_cast %19 : vector<1x16x64xf32> to vector<16x64xf32>
    %21 = arith.truncf %20 : vector<16x64xf32> to vector<16x64xbf16>
    %c0_32 = arith.constant 0 : index
    %c0_33 = arith.constant 0 : index
    %c0_34 = arith.constant 0 : index
    %22 = vector.load %arg5[%c0_32, %c0_33, %c0_34] : memref<3x64x64xbf16, #tpu.memory_space<vmem>>, vector<1x64x64xbf16>
    %23 = vector.shape_cast %22 : vector<1x64x64xbf16> to vector<64x64xbf16>
    %cst_35 = arith.constant dense<0.000000e+00> : vector<16x64xf32>
    %24 = tpu.matmul %21, %23, %cst_35 {dimension_numbers = #tpu.dot_dimension_numbers<[1], [0], [0], [1], [0, 0, 1, 1], [], []>} : vector<16x64xbf16>, vector<64x64xbf16>, vector<16x64xf32> -> vector<16x64xf32>
    %25 = arith.addf %18, %24 : vector<16x64xf32>
    %c0_36 = arith.constant 0 : index
    %c1_37 = arith.constant 1 : index
    %c0_38 = arith.constant 0 : index
    %26 = vector.load %arg15[%c0_36, %c1_37, %c0_38] : memref<2x18x64xf32, #tpu.memory_space<vmem>>, vector<1x16x64xf32>
    %27 = vector.shape_cast %26 : vector<1x16x64xf32> to vector<16x64xf32>
    %28 = arith.truncf %27 : vector<16x64xf32> to vector<16x64xbf16>
    %c1_39 = arith.constant 1 : index
    %c0_40 = arith.constant 0 : index
    %c0_41 = arith.constant 0 : index
    %29 = vector.load %arg5[%c1_39, %c0_40, %c0_41] : memref<3x64x64xbf16, #tpu.memory_space<vmem>>, vector<1x64x64xbf16>
    %30 = vector.shape_cast %29 : vector<1x64x64xbf16> to vector<64x64xbf16>
    %cst_42 = arith.constant dense<0.000000e+00> : vector<16x64xf32>
    %31 = tpu.matmul %28, %30, %cst_42 {dimension_numbers = #tpu.dot_dimension_numbers<[1], [0], [0], [1], [0, 0, 1, 1], [], []>} : vector<16x64xbf16>, vector<64x64xbf16>, vector<16x64xf32> -> vector<16x64xf32>
    %32 = arith.addf %25, %31 : vector<16x64xf32>
    %c0_43 = arith.constant 0 : index
    %c2 = arith.constant 2 : index
    %c0_44 = arith.constant 0 : index
    %33 = vector.load %arg15[%c0_43, %c2, %c0_44] : memref<2x18x64xf32, #tpu.memory_space<vmem>>, vector<1x16x64xf32>
    %34 = vector.shape_cast %33 : vector<1x16x64xf32> to vector<16x64xf32>
    %35 = arith.truncf %34 : vector<16x64xf32> to vector<16x64xbf16>
    %c2_45 = arith.constant 2 : index
    %c0_46 = arith.constant 0 : index
    %c0_47 = arith.constant 0 : index
    %36 = vector.load %arg5[%c2_45, %c0_46, %c0_47] : memref<3x64x64xbf16, #tpu.memory_space<vmem>>, vector<1x64x64xbf16>
    %37 = vector.shape_cast %36 : vector<1x64x64xbf16> to vector<64x64xbf16>
    %cst_48 = arith.constant dense<0.000000e+00> : vector<16x64xf32>
    %38 = tpu.matmul %35, %37, %cst_48 {dimension_numbers = #tpu.dot_dimension_numbers<[1], [0], [0], [1], [0, 0, 1, 1], [], []>} : vector<16x64xbf16>, vector<64x64xbf16>, vector<16x64xf32> -> vector<16x64xf32>
    %39 = arith.addf %32, %38 : vector<16x64xf32>
    %cst_49 = arith.constant 0.000000e+00 : f32
    %40 = vector.broadcast %cst_49 : f32 to vector<16x64xf32>
    %c0_50 = arith.constant 0 : index
    %c0_51 = arith.constant 0 : index
    %c0_52 = arith.constant 0 : index
    %41 = vector.load %arg14[%c0_50, %c0_51, %c0_52] : memref<2x18x32xf32, #tpu.memory_space<vmem>>, vector<1x16x32xf32>
    %42 = vector.shape_cast %41 : vector<1x16x32xf32> to vector<16x32xf32>
    %43 = arith.truncf %42 : vector<16x32xf32> to vector<16x32xbf16>
    %c0_53 = arith.constant 0 : index
    %c0_54 = arith.constant 0 : index
    %c0_55 = arith.constant 0 : index
    %44 = vector.load %arg4[%c0_53, %c0_54, %c0_55] : memref<3x32x64xbf16, #tpu.memory_space<vmem>>, vector<1x32x64xbf16>
    %45 = vector.shape_cast %44 : vector<1x32x64xbf16> to vector<32x64xbf16>
    %cst_56 = arith.constant dense<0.000000e+00> : vector<16x64xf32>
    %46 = tpu.matmul %43, %45, %cst_56 {dimension_numbers = #tpu.dot_dimension_numbers<[1], [0], [0], [1], [0, 0, 1, 1], [], []>} : vector<16x32xbf16>, vector<32x64xbf16>, vector<16x64xf32> -> vector<16x64xf32>
    %47 = arith.addf %40, %46 : vector<16x64xf32>
    %c0_57 = arith.constant 0 : index
    %c1_58 = arith.constant 1 : index
    %c0_59 = arith.constant 0 : index
    %48 = vector.load %arg14[%c0_57, %c1_58, %c0_59] : memref<2x18x32xf32, #tpu.memory_space<vmem>>, vector<1x16x32xf32>
    %49 = vector.shape_cast %48 : vector<1x16x32xf32> to vector<16x32xf32>
    %50 = arith.truncf %49 : vector<16x32xf32> to vector<16x32xbf16>
    %c1_60 = arith.constant 1 : index
    %c0_61 = arith.constant 0 : index
    %c0_62 = arith.constant 0 : index
    %51 = vector.load %arg4[%c1_60, %c0_61, %c0_62] : memref<3x32x64xbf16, #tpu.memory_space<vmem>>, vector<1x32x64xbf16>
    %52 = vector.shape_cast %51 : vector<1x32x64xbf16> to vector<32x64xbf16>
    %cst_63 = arith.constant dense<0.000000e+00> : vector<16x64xf32>
    %53 = tpu.matmul %50, %52, %cst_63 {dimension_numbers = #tpu.dot_dimension_numbers<[1], [0], [0], [1], [0, 0, 1, 1], [], []>} : vector<16x32xbf16>, vector<32x64xbf16>, vector<16x64xf32> -> vector<16x64xf32>
    %54 = arith.addf %47, %53 : vector<16x64xf32>
    %c0_64 = arith.constant 0 : index
    %c2_65 = arith.constant 2 : index
    %c0_66 = arith.constant 0 : index
    %55 = vector.load %arg14[%c0_64, %c2_65, %c0_66] : memref<2x18x32xf32, #tpu.memory_space<vmem>>, vector<1x16x32xf32>
    %56 = vector.shape_cast %55 : vector<1x16x32xf32> to vector<16x32xf32>
    %57 = arith.truncf %56 : vector<16x32xf32> to vector<16x32xbf16>
    %c2_67 = arith.constant 2 : index
    %c0_68 = arith.constant 0 : index
    %c0_69 = arith.constant 0 : index
    %58 = vector.load %arg4[%c2_67, %c0_68, %c0_69] : memref<3x32x64xbf16, #tpu.memory_space<vmem>>, vector<1x32x64xbf16>
    %59 = vector.shape_cast %58 : vector<1x32x64xbf16> to vector<32x64xbf16>
    %cst_70 = arith.constant dense<0.000000e+00> : vector<16x64xf32>
    %60 = tpu.matmul %57, %59, %cst_70 {dimension_numbers = #tpu.dot_dimension_numbers<[1], [0], [0], [1], [0, 0, 1, 1], [], []>} : vector<16x32xbf16>, vector<32x64xbf16>, vector<16x64xf32> -> vector<16x64xf32>
    %61 = arith.addf %54, %60 : vector<16x64xf32>
    %62 = arith.addf %39, %61 : vector<16x64xf32>
    %cst_71 = arith.constant 0.000000e+00 : f32
    %63 = vector.broadcast %cst_71 : f32 to vector<16x64xf32>
    %c1_72 = arith.constant 1 : index
    %c0_73 = arith.constant 0 : index
    %c0_74 = arith.constant 0 : index
    %64 = vector.load %arg15[%c1_72, %c0_73, %c0_74] : memref<2x18x64xf32, #tpu.memory_space<vmem>>, vector<1x16x64xf32>
    %65 = vector.shape_cast %64 : vector<1x16x64xf32> to vector<16x64xf32>
    %66 = arith.truncf %65 : vector<16x64xf32> to vector<16x64xbf16>
    %c0_75 = arith.constant 0 : index
    %c0_76 = arith.constant 0 : index
    %c0_77 = arith.constant 0 : index
    %67 = vector.load %arg5[%c0_75, %c0_76, %c0_77] : memref<3x64x64xbf16, #tpu.memory_space<vmem>>, vector<1x64x64xbf16>
    %68 = vector.shape_cast %67 : vector<1x64x64xbf16> to vector<64x64xbf16>
    %cst_78 = arith.constant dense<0.000000e+00> : vector<16x64xf32>
    %69 = tpu.matmul %66, %68, %cst_78 {dimension_numbers = #tpu.dot_dimension_numbers<[1], [0], [0], [1], [0, 0, 1, 1], [], []>} : vector<16x64xbf16>, vector<64x64xbf16>, vector<16x64xf32> -> vector<16x64xf32>
    %70 = arith.addf %63, %69 : vector<16x64xf32>
    %c1_79 = arith.constant 1 : index
    %c1_80 = arith.constant 1 : index
    %c0_81 = arith.constant 0 : index
    %71 = vector.load %arg15[%c1_79, %c1_80, %c0_81] : memref<2x18x64xf32, #tpu.memory_space<vmem>>, vector<1x16x64xf32>
    %72 = vector.shape_cast %71 : vector<1x16x64xf32> to vector<16x64xf32>
    %73 = arith.truncf %72 : vector<16x64xf32> to vector<16x64xbf16>
    %c1_82 = arith.constant 1 : index
    %c0_83 = arith.constant 0 : index
    %c0_84 = arith.constant 0 : index
    %74 = vector.load %arg5[%c1_82, %c0_83, %c0_84] : memref<3x64x64xbf16, #tpu.memory_space<vmem>>, vector<1x64x64xbf16>
    %75 = vector.shape_cast %74 : vector<1x64x64xbf16> to vector<64x64xbf16>
    %cst_85 = arith.constant dense<0.000000e+00> : vector<16x64xf32>
    %76 = tpu.matmul %73, %75, %cst_85 {dimension_numbers = #tpu.dot_dimension_numbers<[1], [0], [0], [1], [0, 0, 1, 1], [], []>} : vector<16x64xbf16>, vector<64x64xbf16>, vector<16x64xf32> -> vector<16x64xf32>
    %77 = arith.addf %70, %76 : vector<16x64xf32>
    %c1_86 = arith.constant 1 : index
    %c2_87 = arith.constant 2 : index
    %c0_88 = arith.constant 0 : index
    %78 = vector.load %arg15[%c1_86, %c2_87, %c0_88] : memref<2x18x64xf32, #tpu.memory_space<vmem>>, vector<1x16x64xf32>
    %79 = vector.shape_cast %78 : vector<1x16x64xf32> to vector<16x64xf32>
    %80 = arith.truncf %79 : vector<16x64xf32> to vector<16x64xbf16>
    %c2_89 = arith.constant 2 : index
    %c0_90 = arith.constant 0 : index
    %c0_91 = arith.constant 0 : index
    %81 = vector.load %arg5[%c2_89, %c0_90, %c0_91] : memref<3x64x64xbf16, #tpu.memory_space<vmem>>, vector<1x64x64xbf16>
    %82 = vector.shape_cast %81 : vector<1x64x64xbf16> to vector<64x64xbf16>
    %cst_92 = arith.constant dense<0.000000e+00> : vector<16x64xf32>
    %83 = tpu.matmul %80, %82, %cst_92 {dimension_numbers = #tpu.dot_dimension_numbers<[1], [0], [0], [1], [0, 0, 1, 1], [], []>} : vector<16x64xbf16>, vector<64x64xbf16>, vector<16x64xf32> -> vector<16x64xf32>
    %84 = arith.addf %77, %83 : vector<16x64xf32>
    %cst_93 = arith.constant 0.000000e+00 : f32
    %85 = vector.broadcast %cst_93 : f32 to vector<16x64xf32>
    %c1_94 = arith.constant 1 : index
    %c0_95 = arith.constant 0 : index
    %c0_96 = arith.constant 0 : index
    %86 = vector.load %arg14[%c1_94, %c0_95, %c0_96] : memref<2x18x32xf32, #tpu.memory_space<vmem>>, vector<1x16x32xf32>
    %87 = vector.shape_cast %86 : vector<1x16x32xf32> to vector<16x32xf32>
    %88 = arith.truncf %87 : vector<16x32xf32> to vector<16x32xbf16>
    %c0_97 = arith.constant 0 : index
    %c0_98 = arith.constant 0 : index
    %c0_99 = arith.constant 0 : index
    %89 = vector.load %arg4[%c0_97, %c0_98, %c0_99] : memref<3x32x64xbf16, #tpu.memory_space<vmem>>, vector<1x32x64xbf16>
    %90 = vector.shape_cast %89 : vector<1x32x64xbf16> to vector<32x64xbf16>
    %cst_100 = arith.constant dense<0.000000e+00> : vector<16x64xf32>
    %91 = tpu.matmul %88, %90, %cst_100 {dimension_numbers = #tpu.dot_dimension_numbers<[1], [0], [0], [1], [0, 0, 1, 1], [], []>} : vector<16x32xbf16>, vector<32x64xbf16>, vector<16x64xf32> -> vector<16x64xf32>
    %92 = arith.addf %85, %91 : vector<16x64xf32>
    %c1_101 = arith.constant 1 : index
    %c1_102 = arith.constant 1 : index
    %c0_103 = arith.constant 0 : index
    %93 = vector.load %arg14[%c1_101, %c1_102, %c0_103] : memref<2x18x32xf32, #tpu.memory_space<vmem>>, vector<1x16x32xf32>
    %94 = vector.shape_cast %93 : vector<1x16x32xf32> to vector<16x32xf32>
    %95 = arith.truncf %94 : vector<16x32xf32> to vector<16x32xbf16>
    %c1_104 = arith.constant 1 : index
    %c0_105 = arith.constant 0 : index
    %c0_106 = arith.constant 0 : index
    %96 = vector.load %arg4[%c1_104, %c0_105, %c0_106] : memref<3x32x64xbf16, #tpu.memory_space<vmem>>, vector<1x32x64xbf16>
    %97 = vector.shape_cast %96 : vector<1x32x64xbf16> to vector<32x64xbf16>
    %cst_107 = arith.constant dense<0.000000e+00> : vector<16x64xf32>
    %98 = tpu.matmul %95, %97, %cst_107 {dimension_numbers = #tpu.dot_dimension_numbers<[1], [0], [0], [1], [0, 0, 1, 1], [], []>} : vector<16x32xbf16>, vector<32x64xbf16>, vector<16x64xf32> -> vector<16x64xf32>
    %99 = arith.addf %92, %98 : vector<16x64xf32>
    %c1_108 = arith.constant 1 : index
    %c2_109 = arith.constant 2 : index
    %c0_110 = arith.constant 0 : index
    %100 = vector.load %arg14[%c1_108, %c2_109, %c0_110] : memref<2x18x32xf32, #tpu.memory_space<vmem>>, vector<1x16x32xf32>
    %101 = vector.shape_cast %100 : vector<1x16x32xf32> to vector<16x32xf32>
    %102 = arith.truncf %101 : vector<16x32xf32> to vector<16x32xbf16>
    %c2_111 = arith.constant 2 : index
    %c0_112 = arith.constant 0 : index
    %c0_113 = arith.constant 0 : index
    %103 = vector.load %arg4[%c2_111, %c0_112, %c0_113] : memref<3x32x64xbf16, #tpu.memory_space<vmem>>, vector<1x32x64xbf16>
    %104 = vector.shape_cast %103 : vector<1x32x64xbf16> to vector<32x64xbf16>
    %cst_114 = arith.constant dense<0.000000e+00> : vector<16x64xf32>
    %105 = tpu.matmul %102, %104, %cst_114 {dimension_numbers = #tpu.dot_dimension_numbers<[1], [0], [0], [1], [0, 0, 1, 1], [], []>} : vector<16x32xbf16>, vector<32x64xbf16>, vector<16x64xf32> -> vector<16x64xf32>
    %106 = arith.addf %99, %105 : vector<16x64xf32>
    %107 = arith.addf %84, %106 : vector<16x64xf32>
    %cst_115 = arith.constant 0.000000e+00 : f32
    %108 = vector.broadcast %cst_115 : f32 to vector<1x64xf32>
    %cst_116 = arith.constant dense<0.000000e+00> : vector<64xf32>
    %109 = vector.multi_reduction <add>, %62, %cst_116 [0] : vector<16x64xf32> to vector<64xf32>
    %110 = vector.shape_cast %109 : vector<64xf32> to vector<1x64xf32>
    %111 = arith.addf %108, %110 : vector<1x64xf32>
    %cst_117 = arith.constant dense<0.000000e+00> : vector<64xf32>
    %112 = vector.multi_reduction <add>, %107, %cst_117 [0] : vector<16x64xf32> to vector<64xf32>
    %113 = vector.shape_cast %112 : vector<64xf32> to vector<1x64xf32>
    %114 = arith.addf %111, %113 : vector<1x64xf32>
    %c0_118 = arith.constant 0 : index
    %c0_119 = arith.constant 0 : index
    %115 = vector.load %arg7[%c0_118, %c0_119] : memref<64x64xf32, #tpu.memory_space<vmem>>, vector<64x64xf32>
    %cst_120 = arith.constant dense<0.000000e+00> : vector<1x64xf32>
    %116 = tpu.matmul %114, %115, %cst_120 {dimension_numbers = #tpu.dot_dimension_numbers<[1], [0], [0], [1], [0, 0, 1, 1], [], []>} : vector<1x64xf32>, vector<64x64xf32>, vector<1x64xf32> -> vector<1x64xf32>
    %cst_121 = arith.constant 0.001953125 : f32
    %117 = vector.broadcast %cst_121 : f32 to vector<1x64xf32>
    %118 = arith.mulf %116, %117 : vector<1x64xf32>
    %cst_122 = arith.constant 0.000000e+00 : f32
    %119 = vector.broadcast %cst_122 : f32 to vector<1x64xf32>
    %120 = vector.broadcast %118 : vector<1x64xf32> to vector<16x64xf32>
    %121 = arith.subf %62, %120 : vector<16x64xf32>
    %122 = arith.mulf %121, %121 : vector<16x64xf32>
    %cst_123 = arith.constant dense<0.000000e+00> : vector<64xf32>
    %123 = vector.multi_reduction <add>, %122, %cst_123 [0] : vector<16x64xf32> to vector<64xf32>
    %124 = vector.shape_cast %123 : vector<64xf32> to vector<1x64xf32>
    %125 = arith.addf %119, %124 : vector<1x64xf32>
    %126 = vector.broadcast %118 : vector<1x64xf32> to vector<16x64xf32>
    %127 = arith.subf %107, %126 : vector<16x64xf32>
    %128 = arith.mulf %127, %127 : vector<16x64xf32>
    %cst_124 = arith.constant dense<0.000000e+00> : vector<64xf32>
    %129 = vector.multi_reduction <add>, %128, %cst_124 [0] : vector<16x64xf32> to vector<64xf32>
    %130 = vector.shape_cast %129 : vector<64xf32> to vector<1x64xf32>
    %131 = arith.addf %125, %130 : vector<1x64xf32>
    %c0_125 = arith.constant 0 : index
    %c0_126 = arith.constant 0 : index
    %132 = vector.load %arg7[%c0_125, %c0_126] : memref<64x64xf32, #tpu.memory_space<vmem>>, vector<64x64xf32>
    %cst_127 = arith.constant dense<0.000000e+00> : vector<1x64xf32>
    %133 = tpu.matmul %131, %132, %cst_127 {dimension_numbers = #tpu.dot_dimension_numbers<[1], [0], [0], [1], [0, 0, 1, 1], [], []>} : vector<1x64xf32>, vector<64x64xf32>, vector<1x64xf32> -> vector<1x64xf32>
    %cst_128 = arith.constant 0.001953125 : f32
    %134 = vector.broadcast %cst_128 : f32 to vector<1x64xf32>
    %135 = arith.mulf %133, %134 : vector<1x64xf32>
    %cst_129 = arith.constant 9.99999974E-6 : f32
    %136 = vector.broadcast %cst_129 : f32 to vector<1x64xf32>
    %137 = arith.addf %135, %136 : vector<1x64xf32>
    %138 = math.rsqrt %137 : vector<1x64xf32>
    %c0_130 = arith.constant 0 : index
    %c0_131 = arith.constant 0 : index
    %139 = vector.load %arg8[%c0_130, %c0_131] : memref<1x64xf32, #tpu.memory_space<vmem>>, vector<1x64xf32>
    %140 = arith.mulf %138, %139 : vector<1x64xf32>
    %141 = vector.broadcast %118 : vector<1x64xf32> to vector<16x64xf32>
    %142 = arith.subf %62, %141 : vector<16x64xf32>
    %143 = vector.broadcast %140 : vector<1x64xf32> to vector<16x64xf32>
    %144 = arith.mulf %142, %143 : vector<16x64xf32>
    %c0_132 = arith.constant 0 : index
    %c0_133 = arith.constant 0 : index
    %145 = vector.load %arg9[%c0_132, %c0_133] : memref<1x64xf32, #tpu.memory_space<vmem>>, vector<1x64xf32>
    %146 = vector.broadcast %145 : vector<1x64xf32> to vector<16x64xf32>
    %147 = arith.addf %144, %146 : vector<16x64xf32>
    %cst_134 = arith.constant 0.000000e+00 : f32
    %148 = vector.broadcast %cst_134 : f32 to vector<16x64xf32>
    %149 = arith.maximumf %147, %148 : vector<16x64xf32>
    %150 = vector.broadcast %118 : vector<1x64xf32> to vector<16x64xf32>
    %151 = arith.subf %107, %150 : vector<16x64xf32>
    %152 = vector.broadcast %140 : vector<1x64xf32> to vector<16x64xf32>
    %153 = arith.mulf %151, %152 : vector<16x64xf32>
    %c0_135 = arith.constant 0 : index
    %c0_136 = arith.constant 0 : index
    %154 = vector.load %arg9[%c0_135, %c0_136] : memref<1x64xf32, #tpu.memory_space<vmem>>, vector<1x64xf32>
    %155 = vector.broadcast %154 : vector<1x64xf32> to vector<16x64xf32>
    %156 = arith.addf %153, %155 : vector<16x64xf32>
    %cst_137 = arith.constant 0.000000e+00 : f32
    %157 = vector.broadcast %cst_137 : f32 to vector<16x64xf32>
    %158 = arith.maximumf %156, %157 : vector<16x64xf32>
    %cst_138 = arith.constant 0.000000e+00 : f32
    %159 = vector.broadcast %cst_138 : f32 to vector<2x1x64xf32>
    %c0_139 = arith.constant 0 : index
    %c0_140 = arith.constant 0 : index
    %c0_141 = arith.constant 0 : index
    %160 = vector.load %arg16[%c0_139, %c0_140, %c0_141] : memref<2x18x64xf32, #tpu.memory_space<vmem>>, vector<2x1x64xf32>
    tpu.vector_store %arg16[%c0_139, %c0_140, %c0_141], %159 {strides = array<i32>} : memref<2x18x64xf32, #tpu.memory_space<vmem>>, vector<2x1x64xf32>,
    %cst_142 = arith.constant 0.000000e+00 : f32
    %161 = vector.broadcast %cst_142 : f32 to vector<2x1x64xf32>
    %c0_143 = arith.constant 0 : index
    %c17_144 = arith.constant 17 : index
    %c0_145 = arith.constant 0 : index
    %162 = vector.load %arg16[%c0_143, %c17_144, %c0_145] : memref<2x18x64xf32, #tpu.memory_space<vmem>>, vector<2x1x64xf32>
    tpu.vector_store %arg16[%c0_143, %c17_144, %c0_145], %161 {strides = array<i32>} : memref<2x18x64xf32, #tpu.memory_space<vmem>>, vector<2x1x64xf32>,
    %163 = vector.shape_cast %149 : vector<16x64xf32> to vector<1x16x64xf32>
    %c0_146 = arith.constant 0 : index
    %c1_147 = arith.constant 1 : index
    %c0_148 = arith.constant 0 : index
    %164 = vector.load %arg16[%c0_146, %c1_147, %c0_148] : memref<2x18x64xf32, #tpu.memory_space<vmem>>, vector<1x16x64xf32>
    tpu.vector_store %arg16[%c0_146, %c1_147, %c0_148], %163 {strides = array<i32>} : memref<2x18x64xf32, #tpu.memory_space<vmem>>, vector<1x16x64xf32>,
    %165 = vector.shape_cast %158 : vector<16x64xf32> to vector<1x16x64xf32>
    %c1_149 = arith.constant 1 : index
    %c1_150 = arith.constant 1 : index
    %c0_151 = arith.constant 0 : index
    %166 = vector.load %arg16[%c1_149, %c1_150, %c0_151] : memref<2x18x64xf32, #tpu.memory_space<vmem>>, vector<1x16x64xf32>
    tpu.vector_store %arg16[%c1_149, %c1_150, %c0_151], %165 {strides = array<i32>} : memref<2x18x64xf32, #tpu.memory_space<vmem>>, vector<1x16x64xf32>,
    %cst_152 = arith.constant 0.000000e+00 : f32
    %167 = vector.broadcast %cst_152 : f32 to vector<16x64xf32>
    %c0_153 = arith.constant 0 : index
    %c0_154 = arith.constant 0 : index
    %c0_155 = arith.constant 0 : index
    %168 = vector.load %arg16[%c0_153, %c0_154, %c0_155] : memref<2x18x64xf32, #tpu.memory_space<vmem>>, vector<1x16x64xf32>
    %169 = vector.shape_cast %168 : vector<1x16x64xf32> to vector<16x64xf32>
    %170 = arith.truncf %169 : vector<16x64xf32> to vector<16x64xbf16>
    %c0_156 = arith.constant 0 : index
    %c0_157 = arith.constant 0 : index
    %c0_158 = arith.constant 0 : index
    %171 = vector.load %arg6[%c0_156, %c0_157, %c0_158] : memref<3x64x64xbf16, #tpu.memory_space<vmem>>, vector<1x64x64xbf16>
    %172 = vector.shape_cast %171 : vector<1x64x64xbf16> to vector<64x64xbf16>
    %cst_159 = arith.constant dense<0.000000e+00> : vector<16x64xf32>
    %173 = tpu.matmul %170, %172, %cst_159 {dimension_numbers = #tpu.dot_dimension_numbers<[1], [0], [0], [1], [0, 0, 1, 1], [], []>} : vector<16x64xbf16>, vector<64x64xbf16>, vector<16x64xf32> -> vector<16x64xf32>
    %174 = arith.addf %167, %173 : vector<16x64xf32>
    %c0_160 = arith.constant 0 : index
    %c1_161 = arith.constant 1 : index
    %c0_162 = arith.constant 0 : index
    %175 = vector.load %arg16[%c0_160, %c1_161, %c0_162] : memref<2x18x64xf32, #tpu.memory_space<vmem>>, vector<1x16x64xf32>
    %176 = vector.shape_cast %175 : vector<1x16x64xf32> to vector<16x64xf32>
    %177 = arith.truncf %176 : vector<16x64xf32> to vector<16x64xbf16>
    %c1_163 = arith.constant 1 : index
    %c0_164 = arith.constant 0 : index
    %c0_165 = arith.constant 0 : index
    %178 = vector.load %arg6[%c1_163, %c0_164, %c0_165] : memref<3x64x64xbf16, #tpu.memory_space<vmem>>, vector<1x64x64xbf16>
    %179 = vector.shape_cast %178 : vector<1x64x64xbf16> to vector<64x64xbf16>
    %cst_166 = arith.constant dense<0.000000e+00> : vector<16x64xf32>
    %180 = tpu.matmul %177, %179, %cst_166 {dimension_numbers = #tpu.dot_dimension_numbers<[1], [0], [0], [1], [0, 0, 1, 1], [], []>} : vector<16x64xbf16>, vector<64x64xbf16>, vector<16x64xf32> -> vector<16x64xf32>
    %181 = arith.addf %174, %180 : vector<16x64xf32>
    %c0_167 = arith.constant 0 : index
    %c2_168 = arith.constant 2 : index
    %c0_169 = arith.constant 0 : index
    %182 = vector.load %arg16[%c0_167, %c2_168, %c0_169] : memref<2x18x64xf32, #tpu.memory_space<vmem>>, vector<1x16x64xf32>
    %183 = vector.shape_cast %182 : vector<1x16x64xf32> to vector<16x64xf32>
    %184 = arith.truncf %183 : vector<16x64xf32> to vector<16x64xbf16>
    %c2_170 = arith.constant 2 : index
    %c0_171 = arith.constant 0 : index
    %c0_172 = arith.constant 0 : index
    %185 = vector.load %arg6[%c2_170, %c0_171, %c0_172] : memref<3x64x64xbf16, #tpu.memory_space<vmem>>, vector<1x64x64xbf16>
    %186 = vector.shape_cast %185 : vector<1x64x64xbf16> to vector<64x64xbf16>
    %cst_173 = arith.constant dense<0.000000e+00> : vector<16x64xf32>
    %187 = tpu.matmul %184, %186, %cst_173 {dimension_numbers = #tpu.dot_dimension_numbers<[1], [0], [0], [1], [0, 0, 1, 1], [], []>} : vector<16x64xbf16>, vector<64x64xbf16>, vector<16x64xf32> -> vector<16x64xf32>
    %188 = arith.addf %181, %187 : vector<16x64xf32>
    %cst_174 = arith.constant 0.000000e+00 : f32
    %189 = vector.broadcast %cst_174 : f32 to vector<16x64xf32>
    %c1_175 = arith.constant 1 : index
    %c0_176 = arith.constant 0 : index
    %c0_177 = arith.constant 0 : index
    %190 = vector.load %arg16[%c1_175, %c0_176, %c0_177] : memref<2x18x64xf32, #tpu.memory_space<vmem>>, vector<1x16x64xf32>
    %191 = vector.shape_cast %190 : vector<1x16x64xf32> to vector<16x64xf32>
    %192 = arith.truncf %191 : vector<16x64xf32> to vector<16x64xbf16>
    %c0_178 = arith.constant 0 : index
    %c0_179 = arith.constant 0 : index
    %c0_180 = arith.constant 0 : index
    %193 = vector.load %arg6[%c0_178, %c0_179, %c0_180] : memref<3x64x64xbf16, #tpu.memory_space<vmem>>, vector<1x64x64xbf16>
    %194 = vector.shape_cast %193 : vector<1x64x64xbf16> to vector<64x64xbf16>
    %cst_181 = arith.constant dense<0.000000e+00> : vector<16x64xf32>
    %195 = tpu.matmul %192, %194, %cst_181 {dimension_numbers = #tpu.dot_dimension_numbers<[1], [0], [0], [1], [0, 0, 1, 1], [], []>} : vector<16x64xbf16>, vector<64x64xbf16>, vector<16x64xf32> -> vector<16x64xf32>
    %196 = arith.addf %189, %195 : vector<16x64xf32>
    %c1_182 = arith.constant 1 : index
    %c1_183 = arith.constant 1 : index
    %c0_184 = arith.constant 0 : index
    %197 = vector.load %arg16[%c1_182, %c1_183, %c0_184] : memref<2x18x64xf32, #tpu.memory_space<vmem>>, vector<1x16x64xf32>
    %198 = vector.shape_cast %197 : vector<1x16x64xf32> to vector<16x64xf32>
    %199 = arith.truncf %198 : vector<16x64xf32> to vector<16x64xbf16>
    %c1_185 = arith.constant 1 : index
    %c0_186 = arith.constant 0 : index
    %c0_187 = arith.constant 0 : index
    %200 = vector.load %arg6[%c1_185, %c0_186, %c0_187] : memref<3x64x64xbf16, #tpu.memory_space<vmem>>, vector<1x64x64xbf16>
    %201 = vector.shape_cast %200 : vector<1x64x64xbf16> to vector<64x64xbf16>
    %cst_188 = arith.constant dense<0.000000e+00> : vector<16x64xf32>
    %202 = tpu.matmul %199, %201, %cst_188 {dimension_numbers = #tpu.dot_dimension_numbers<[1], [0], [0], [1], [0, 0, 1, 1], [], []>} : vector<16x64xbf16>, vector<64x64xbf16>, vector<16x64xf32> -> vector<16x64xf32>
    %203 = arith.addf %196, %202 : vector<16x64xf32>
    %c1_189 = arith.constant 1 : index
    %c2_190 = arith.constant 2 : index
    %c0_191 = arith.constant 0 : index
    %204 = vector.load %arg16[%c1_189, %c2_190, %c0_191] : memref<2x18x64xf32, #tpu.memory_space<vmem>>, vector<1x16x64xf32>
    %205 = vector.shape_cast %204 : vector<1x16x64xf32> to vector<16x64xf32>
    %206 = arith.truncf %205 : vector<16x64xf32> to vector<16x64xbf16>
    %c2_192 = arith.constant 2 : index
    %c0_193 = arith.constant 0 : index
    %c0_194 = arith.constant 0 : index
    %207 = vector.load %arg6[%c2_192, %c0_193, %c0_194] : memref<3x64x64xbf16, #tpu.memory_space<vmem>>, vector<1x64x64xbf16>
    %208 = vector.shape_cast %207 : vector<1x64x64xbf16> to vector<64x64xbf16>
    %cst_195 = arith.constant dense<0.000000e+00> : vector<16x64xf32>
    %209 = tpu.matmul %206, %208, %cst_195 {dimension_numbers = #tpu.dot_dimension_numbers<[1], [0], [0], [1], [0, 0, 1, 1], [], []>} : vector<16x64xbf16>, vector<64x64xbf16>, vector<16x64xf32> -> vector<16x64xf32>
    %210 = arith.addf %203, %209 : vector<16x64xf32>
    %cst_196 = arith.constant 0.000000e+00 : f32
    %211 = vector.broadcast %cst_196 : f32 to vector<1x64xf32>
    %cst_197 = arith.constant dense<0.000000e+00> : vector<64xf32>
    %212 = vector.multi_reduction <add>, %188, %cst_197 [0] : vector<16x64xf32> to vector<64xf32>
    %213 = vector.shape_cast %212 : vector<64xf32> to vector<1x64xf32>
    %214 = arith.addf %211, %213 : vector<1x64xf32>
    %cst_198 = arith.constant dense<0.000000e+00> : vector<64xf32>
    %215 = vector.multi_reduction <add>, %210, %cst_198 [0] : vector<16x64xf32> to vector<64xf32>
    %216 = vector.shape_cast %215 : vector<64xf32> to vector<1x64xf32>
    %217 = arith.addf %214, %216 : vector<1x64xf32>
    %c0_199 = arith.constant 0 : index
    %c0_200 = arith.constant 0 : index
    %218 = vector.load %arg10[%c0_199, %c0_200] : memref<64x64xf32, #tpu.memory_space<vmem>>, vector<64x64xf32>
    %cst_201 = arith.constant dense<0.000000e+00> : vector<1x64xf32>
    %219 = tpu.matmul %217, %218, %cst_201 {dimension_numbers = #tpu.dot_dimension_numbers<[1], [0], [0], [1], [0, 0, 1, 1], [], []>} : vector<1x64xf32>, vector<64x64xf32>, vector<1x64xf32> -> vector<1x64xf32>
    %cst_202 = arith.constant 0.001953125 : f32
    %220 = vector.broadcast %cst_202 : f32 to vector<1x64xf32>
    %221 = arith.mulf %219, %220 : vector<1x64xf32>
    %cst_203 = arith.constant 0.000000e+00 : f32
    %222 = vector.broadcast %cst_203 : f32 to vector<1x64xf32>
    %223 = vector.broadcast %221 : vector<1x64xf32> to vector<16x64xf32>
    %224 = arith.subf %188, %223 : vector<16x64xf32>
    %225 = arith.mulf %224, %224 : vector<16x64xf32>
    %cst_204 = arith.constant dense<0.000000e+00> : vector<64xf32>
    %226 = vector.multi_reduction <add>, %225, %cst_204 [0] : vector<16x64xf32> to vector<64xf32>
    %227 = vector.shape_cast %226 : vector<64xf32> to vector<1x64xf32>
    %228 = arith.addf %222, %227 : vector<1x64xf32>
    %229 = vector.broadcast %221 : vector<1x64xf32> to vector<16x64xf32>
    %230 = arith.subf %210, %229 : vector<16x64xf32>
    %231 = arith.mulf %230, %230 : vector<16x64xf32>
    %cst_205 = arith.constant dense<0.000000e+00> : vector<64xf32>
    %232 = vector.multi_reduction <add>, %231, %cst_205 [0] : vector<16x64xf32> to vector<64xf32>
    %233 = vector.shape_cast %232 : vector<64xf32> to vector<1x64xf32>
    %234 = arith.addf %228, %233 : vector<1x64xf32>
    %c0_206 = arith.constant 0 : index
    %c0_207 = arith.constant 0 : index
    %235 = vector.load %arg10[%c0_206, %c0_207] : memref<64x64xf32, #tpu.memory_space<vmem>>, vector<64x64xf32>
    %cst_208 = arith.constant dense<0.000000e+00> : vector<1x64xf32>
    %236 = tpu.matmul %234, %235, %cst_208 {dimension_numbers = #tpu.dot_dimension_numbers<[1], [0], [0], [1], [0, 0, 1, 1], [], []>} : vector<1x64xf32>, vector<64x64xf32>, vector<1x64xf32> -> vector<1x64xf32>
    %cst_209 = arith.constant 0.001953125 : f32
    %237 = vector.broadcast %cst_209 : f32 to vector<1x64xf32>
    %238 = arith.mulf %236, %237 : vector<1x64xf32>
    %cst_210 = arith.constant 9.99999974E-6 : f32
    %239 = vector.broadcast %cst_210 : f32 to vector<1x64xf32>
    %240 = arith.addf %238, %239 : vector<1x64xf32>
    %241 = math.rsqrt %240 : vector<1x64xf32>
    %c0_211 = arith.constant 0 : index
    %c0_212 = arith.constant 0 : index
    %242 = vector.load %arg11[%c0_211, %c0_212] : memref<1x64xf32, #tpu.memory_space<vmem>>, vector<1x64xf32>
    %243 = arith.mulf %241, %242 : vector<1x64xf32>
    %244 = vector.broadcast %221 : vector<1x64xf32> to vector<16x64xf32>
    %245 = arith.subf %188, %244 : vector<16x64xf32>
    %246 = vector.broadcast %243 : vector<1x64xf32> to vector<16x64xf32>
    %247 = arith.mulf %245, %246 : vector<16x64xf32>
    %c0_213 = arith.constant 0 : index
    %c0_214 = arith.constant 0 : index
    %248 = vector.load %arg12[%c0_213, %c0_214] : memref<1x64xf32, #tpu.memory_space<vmem>>, vector<1x64xf32>
    %249 = vector.broadcast %248 : vector<1x64xf32> to vector<16x64xf32>
    %250 = arith.addf %247, %249 : vector<16x64xf32>
    %cst_215 = arith.constant 0.000000e+00 : f32
    %251 = vector.broadcast %cst_215 : f32 to vector<16x64xf32>
    %252 = arith.maximumf %250, %251 : vector<16x64xf32>
    %253 = vector.broadcast %221 : vector<1x64xf32> to vector<16x64xf32>
    %254 = arith.subf %210, %253 : vector<16x64xf32>
    %255 = vector.broadcast %243 : vector<1x64xf32> to vector<16x64xf32>
    %256 = arith.mulf %254, %255 : vector<16x64xf32>
    %c0_216 = arith.constant 0 : index
    %c0_217 = arith.constant 0 : index
    %257 = vector.load %arg12[%c0_216, %c0_217] : memref<1x64xf32, #tpu.memory_space<vmem>>, vector<1x64xf32>
    %258 = vector.broadcast %257 : vector<1x64xf32> to vector<16x64xf32>
    %259 = arith.addf %256, %258 : vector<16x64xf32>
    %cst_218 = arith.constant 0.000000e+00 : f32
    %260 = vector.broadcast %cst_218 : f32 to vector<16x64xf32>
    %261 = arith.maximumf %259, %260 : vector<16x64xf32>
    %262 = vector.shape_cast %252 : vector<16x64xf32> to vector<1x16x64xf32>
    %c0_219 = arith.constant 0 : index
    %c0_220 = arith.constant 0 : index
    %c0_221 = arith.constant 0 : index
    %263 = vector.load %arg13[%c0_219, %c0_220, %c0_221] : memref<2x16x64xf32, #tpu.memory_space<vmem>>, vector<1x16x64xf32>
    tpu.vector_store %arg13[%c0_219, %c0_220, %c0_221], %262 {strides = array<i32>} : memref<2x16x64xf32, #tpu.memory_space<vmem>>, vector<1x16x64xf32>,
    %264 = vector.shape_cast %261 : vector<16x64xf32> to vector<1x16x64xf32>
    %c1_222 = arith.constant 1 : index
    %c0_223 = arith.constant 0 : index
    %c0_224 = arith.constant 0 : index
    %265 = vector.load %arg13[%c1_222, %c0_223, %c0_224] : memref<2x16x64xf32, #tpu.memory_space<vmem>>, vector<1x16x64xf32>
    tpu.vector_store %arg13[%c1_222, %c0_223, %c0_224], %264 {strides = array<i32>} : memref<2x16x64xf32, #tpu.memory_space<vmem>>, vector<1x16x64xf32>,
    return
  }
  func.func @transform_0(%arg0: i32) -> (i32, i32, i32) {
    %c0_i32 = arith.constant 0 : i32
    %c0_i32_0 = arith.constant 0 : i32
    %c0_i32_1 = arith.constant 0 : i32
    %c0_i32_2 = arith.constant 0 : i32
    return %c0_i32, %c0_i32_0, %c0_i32_1 : i32, i32, i32
  }
  func.func @transform_1(%arg0: i32) -> (i32, i32, i32) {
    %c0_i32 = arith.constant 0 : i32
    %c0_i32_0 = arith.constant 0 : i32
    %c0_i32_1 = arith.constant 0 : i32
    %c0_i32_2 = arith.constant 0 : i32
    return %c0_i32, %c0_i32_0, %c0_i32_1 : i32, i32, i32
  }
  func.func @transform_2(%arg0: i32) -> (i32, i32) {
    %c0_i32 = arith.constant 0 : i32
    %c0_i32_0 = arith.constant 0 : i32
    %c0_i32_1 = arith.constant 0 : i32
    return %c0_i32, %c0_i32_0 : i32, i32
  }
  func.func @transform_3(%arg0: i32) -> (i32, i32, i32) {
    %c0_i32 = arith.constant 0 : i32
    %c0_i32_0 = arith.constant 0 : i32
    %c0_i32_1 = arith.constant 0 : i32
    %c0_i32_2 = arith.constant 0 : i32
    return %c0_i32, %c0_i32_0, %c0_i32_1 : i32, i32, i32
  }
  func.func @transform_4(%arg0: i32) -> (i32, i32, i32) {
    %c0_i32 = arith.constant 0 : i32
    %c0_i32_0 = arith.constant 0 : i32
    %c0_i32_1 = arith.constant 0 : i32
    %c0_i32_2 = arith.constant 0 : i32
    return %c0_i32, %c0_i32_0, %c0_i32_1 : i32, i32, i32
  }
  func.func @transform_5(%arg0: i32) -> (i32, i32, i32) {
    %c0_i32 = arith.constant 0 : i32
    %c0_i32_0 = arith.constant 0 : i32
    %c0_i32_1 = arith.constant 0 : i32
    %c0_i32_2 = arith.constant 0 : i32
    return %c0_i32, %c0_i32_0, %c0_i32_1 : i32, i32, i32
  }
  func.func @transform_6(%arg0: i32) -> (i32, i32) {
    %c0_i32 = arith.constant 0 : i32
    %c0_i32_0 = arith.constant 0 : i32
    %c0_i32_1 = arith.constant 0 : i32
    return %c0_i32, %c0_i32_0 : i32, i32
  }
  func.func @transform_7(%arg0: i32) -> (i32, i32) {
    %c0_i32 = arith.constant 0 : i32
    %c0_i32_0 = arith.constant 0 : i32
    %c0_i32_1 = arith.constant 0 : i32
    return %c0_i32, %c0_i32_0 : i32, i32
  }
  func.func @transform_8(%arg0: i32) -> (i32, i32) {
    %c0_i32 = arith.constant 0 : i32
    %c0_i32_0 = arith.constant 0 : i32
    %c0_i32_1 = arith.constant 0 : i32
    return %c0_i32, %c0_i32_0 : i32, i32
  }
  func.func @transform_9(%arg0: i32) -> (i32, i32) {
    %c0_i32 = arith.constant 0 : i32
    %c0_i32_0 = arith.constant 0 : i32
    %c0_i32_1 = arith.constant 0 : i32
    return %c0_i32, %c0_i32_0 : i32, i32
  }
  func.func @transform_10(%arg0: i32) -> (i32, i32) {
    %c0_i32 = arith.constant 0 : i32
    %c0_i32_0 = arith.constant 0 : i32
    %c0_i32_1 = arith.constant 0 : i32
    return %c0_i32, %c0_i32_0 : i32, i32
  }
  func.func @transform_11(%arg0: i32) -> (i32, i32) {
    %c0_i32 = arith.constant 0 : i32
    %c0_i32_0 = arith.constant 0 : i32
    %c0_i32_1 = arith.constant 0 : i32
    return %c0_i32, %c0_i32_0 : i32, i32
  }
  func.func @transform_12(%arg0: i32) -> (i32, i32, i32) {
    %c0_i32 = arith.constant 0 : i32
    %c0_i32_0 = arith.constant 0 : i32
    %c0_i32_1 = arith.constant 0 : i32
    %c0_i32_2 = arith.constant 0 : i32
    return %c0_i32, %c0_i32_0, %c0_i32_1 : i32, i32, i32
  }
}

</mosaic_0001>

<llo_original>
// kernel: tile.23
$region0: #{tile.23}
  #allocation0 [shape = 's32[1]{0}', space=sflag, size = 0x4, scoped, tag = 'scoped memory for tile.23']
  %s0 = inlined_call_operand.vmem [shape: f32[4], index: 0, kind: input, shape index: {}]
  %s1 = inlined_call_operand.vmem [shape: f32[16,4], index: 1, kind: output, shape index: {}]
  // Predicated region
  $region2: #{tile.23} parent=0 // pred_check
    _
  $region3: #{tile.23} parent=0 // pred_check_branch
    %3 = sbr.rel (0) target = $region5
  $region4: #{tile.23} parent=0 // pred_region
    _
  $region5: #{tile.23} parent=0 // pred_fallthru
    _
  %v4 = vld [vmem:[%s0] ss:$0 sm:$0xff]
  %5 = vst [vmem:[%s1] sm:$0xff] %v4
  %s6 = scalar_lea.vmem %s1, 8
  %7 = vst [vmem:[%s6] sm:$0xff] %v4

// kernel: tile.24
$region0: #{tile.24}
  %s0 = inlined_call_operand.vmem [shape: f32[16,4], index: 0, kind: input, shape index: {}]
  %s1 = inlined_call_operand.vmem [shape: f32[1,64], index: 1, kind: output, shape index: {}]
  $region1: #{tile.24} parent=0
    #allocation0 [shape = 'u8[4096]{0}', space=vmem, size = 0x1000, scoped, tag = 'scoped mem for output reshape']
    %v2 = vld [vmem:[%s0] sm:$0x1]
    %vm3 = vcmask 31744
    %4 = vst.msk [vmem:[#allocation0] sm:$0x1] %vm3, %v2
    %s5 = scalar_lea.vmem %s0, 15
    %v6 = vld [vmem:[%s5] sm:$0x1]
    %7 = vrot.lane.b32.xlu0 %v6, 60
    %v8 = vpop.permute.xlu0 %7
    %vm9 = vcmask 523744
    %10 = vst.msk [vmem:[#allocation0] sm:$0x1] %vm9, %v8
    %s11 = scalar_lea.vmem %s0, 14
    %v12 = vld [vmem:[%s11] sm:$0x1]
    %13 = vrot.lane.b32.xlu0 %v12, 56
    %v14 = vpop.permute.xlu0 %13
    %vm15 = vcmask 490944
    %16 = vst.msk [vmem:[#allocation0] sm:$0x1] %vm15, %v14
    %s17 = scalar_lea.vmem %s0, 13
    %v18 = vld [vmem:[%s17] sm:$0x1]
    %19 = vrot.lane.b32.xlu0 %v18, 52
    %v20 = vpop.permute.xlu0 %19
    %vm21 = vcmask 458144
    %22 = vst.msk [vmem:[#allocation0] sm:$0x1] %vm21, %v20
    %s23 = scalar_lea.vmem %s0, 12
    %v24 = vld [vmem:[%s23] sm:$0x1]
    %25 = vrot.lane.b32.xlu0 %v24, 48
    %v26 = vpop.permute.xlu0 %25
    %vm27 = vcmask 425344
    %28 = vst.msk [vmem:[#allocation0] sm:$0x1] %vm27, %v26
    %s29 = scalar_lea.vmem %s0, 11
    %v30 = vld [vmem:[%s29] sm:$0x1]
    %31 = vrot.lane.b32.xlu0 %v30, 44
    %v32 = vpop.permute.xlu0 %31
    %vm33 = vcmask 392544
    %34 = vst.msk [vmem:[#allocation0] sm:$0x1] %vm33, %v32
    %s35 = scalar_lea.vmem %s0, 10
    %v36 = vld [vmem:[%s35] sm:$0x1]
    %37 = vrot.lane.b32.xlu0 %v36, 40
    %v38 = vpop.permute.xlu0 %37
    %vm39 = vcmask 359744
    %40 = vst.msk [vmem:[#allocation0] sm:$0x1] %vm39, %v38
    %s41 = scalar_lea.vmem %s0, 9
    %v42 = vld [vmem:[%s41] sm:$0x1]
    %43 = vrot.lane.b32.xlu0 %v42, 36
    %v44 = vpop.permute.xlu0 %43
    %vm45 = vcmask 326944
    %46 = vst.msk [vmem:[#allocation0] sm:$0x1] %vm45, %v44
    %s47 = scalar_lea.vmem %s0, 8
    %v48 = vld [vmem:[%s47] sm:$0x1]
    %49 = vrot.lane.b32.xlu0 %v48, 32
    %v50 = vpop.permute.xlu0 %49
    %vm51 = vcmask 294144
    %52 = vst.msk [vmem:[#allocation0] sm:$0x1] %vm51, %v50
    %s53 = scalar_lea.vmem %s0, 7
    %v54 = vld [vmem:[%s53] sm:$0x1]
    %55 = vrot.lane.b32.xlu0 %v54, 28
    %v56 = vpop.permute.xlu0 %55
    %vm57 = vcmask 261344
    %58 = vst.msk [vmem:[#allocation0] sm:$0x1] %vm57, %v56
    %s59 = scalar_lea.vmem %s0, 6
    %v60 = vld [vmem:[%s59] sm:$0x1]
    %61 = vrot.lane.b32.xlu0 %v60, 24
    %v62 = vpop.permute.xlu0 %61
    %vm63 = vcmask 228544
    %64 = vst.msk [vmem:[#allocation0] sm:$0x1] %vm63, %v62
    %s65 = scalar_lea.vmem %s0, 5
    %v66 = vld [vmem:[%s65] sm:$0x1]
    %67 = vrot.lane.b32.xlu0 %v66, 20
    %v68 = vpop.permute.xlu0 %67
    %vm69 = vcmask 195744
    %70 = vst.msk [vmem:[#allocation0] sm:$0x1] %vm69, %v68
    %s71 = scalar_lea.vmem %s0, 4
    %v72 = vld [vmem:[%s71] sm:$0x1]
    %73 = vrot.lane.b32.xlu0 %v72, 16
    %v74 = vpop.permute.xlu0 %73
    %vm75 = vcmask 162944
    %76 = vst.msk [vmem:[#allocation0] sm:$0x1] %vm75, %v74
    %s77 = scalar_lea.vmem %s0, 3
    %v78 = vld [vmem:[%s77] sm:$0x1]
    %79 = vrot.lane.b32.xlu0 %v78, 12
    %v80 = vpop.permute.xlu0 %79
    %vm81 = vcmask 130144
    %82 = vst.msk [vmem:[#allocation0] sm:$0x1] %vm81, %v80
    %s83 = scalar_lea.vmem %s0, 2
    %v84 = vld [vmem:[%s83] sm:$0x1]
    %85 = vrot.lane.b32.xlu0 %v84, 8
    %v86 = vpop.permute.xlu0 %85
    %vm87 = vcmask 97344
    %88 = vst.msk [vmem:[#allocation0] sm:$0x1] %vm87, %v86
    %s89 = scalar_lea.vmem %s0, 1
    %v90 = vld [vmem:[%s89] sm:$0x1]
    %91 = vrot.lane.b32.xlu0 %v90, 4
    %v92 = vpop.permute.xlu0 %91
    %vm93 = vcmask 64544
    %94 = vst.msk [vmem:[#allocation0] sm:$0x1] %vm93, %v92
    %s96 = sshllo.u32 0, 1
    %v98 = vld [vmem:[#allocation0] sm:%s96]
    %s99 = sshllo.u32 0, 1
    %100 = vst [vmem:[%s1] sm:%s99] %v98

// kernel: up_forward.1
$region0: #{up_forward.1}
  #allocation0 [shape = 'u32[]', space=smem, size = 0x4, offset = 0x4, fixed_abs, tag = 'smem constant byte address 0x4 - core index']
  #allocation1 [shape = 'u32[144,128]{1,0:T(1,128)}', space=vmem, size = 0x12000, scoped, tag = 'internal scratch']
  #allocation2 [shape = 'f32[2,18,32]{2,1,0:T(8,128)}', space=vmem, size = 0x6000, scoped, tag = 'scratch operand']
  #allocation3 [shape = 'f32[2,18,64]{2,1,0:T(8,128)}', space=vmem, size = 0x6000, scoped, tag = 'scratch operand']
  #allocation4 [shape = 'f32[2,18,64]{2,1,0:T(8,128)}', space=vmem, size = 0x6000, scoped, tag = 'scratch operand']
  %s0 = inlined_call_operand.vmem [shape: f32[2,8,32], index: 0, kind: input, shape index: {}]
  %s1 = inlined_call_operand.vmem [shape: f32[2,16,64], index: 1, kind: input, shape index: {}]
  %s2 = inlined_call_operand.vmem [shape: f32[18,8], index: 2, kind: input, shape index: {}]
  %s3 = inlined_call_operand.vmem [shape: bf16[3,32,64], index: 3, kind: input, shape index: {}]
  %s4 = inlined_call_operand.vmem [shape: bf16[3,64,64], index: 4, kind: input, shape index: {}]
  %s5 = inlined_call_operand.vmem [shape: bf16[3,64,64], index: 5, kind: input, shape index: {}]
  %s6 = inlined_call_operand.vmem [shape: f32[64,64], index: 6, kind: input, shape index: {}, may-alias: {6,9}]
  %s7 = inlined_call_operand.vmem [shape: f32[1,64], index: 7, kind: input, shape index: {}]
  %s8 = inlined_call_operand.vmem [shape: f32[1,64], index: 8, kind: input, shape index: {}]
  %s9 = inlined_call_operand.vmem [shape: f32[64,64], index: 9, kind: input, shape index: {}, may-alias: {6,9}]
  %s10 = inlined_call_operand.vmem [shape: f32[1,64], index: 10, kind: input, shape index: {}]
  %s11 = inlined_call_operand.vmem [shape: f32[1,64], index: 11, kind: input, shape index: {}]
  %s12 = inlined_call_operand.vmem [shape: f32[2,16,64], index: 12, kind: output, shape index: {}]
  %s13 = sld [smem:[#allocation0]]
  $region58: #{up_forward.1} parent=0
    _
  %s15 = ssub.s32 1, %s13
  %s16 = scalar_select 0, %s15, %s13
  // Predicated region
  $region2: #{up_forward.1} parent=0 // pred_check
    _
  $region3: #{up_forward.1} parent=0 // pred_check_branch
    %18 = sbr.rel (0) target = $region5
  $region4: #{up_forward.1} parent=0 // pred_region
    _
  $region5: #{up_forward.1} parent=0 // pred_fallthru
    _
  // Predicated region
  $region6: #{up_forward.1} parent=0 // pred_check
    _
  $region7: #{up_forward.1} parent=0 // pred_check_branch
    %20 = sbr.rel (0) target = $region9
  $region8: #{up_forward.1} parent=0 // pred_region
    _
  $region9: #{up_forward.1} parent=0 // pred_fallthru
    _
  // Predicated region
  $region10: #{up_forward.1} parent=0 // pred_check
    _
  $region11: #{up_forward.1} parent=0 // pred_check_branch
    %22 = sbr.rel (0) target = $region13
  $region12: #{up_forward.1} parent=0 // pred_region
    _
  $region13: #{up_forward.1} parent=0 // pred_fallthru
    _
  // Predicated region
  $region14: #{up_forward.1} parent=0 // pred_check
    _
  $region15: #{up_forward.1} parent=0 // pred_check_branch
    %24 = sbr.rel (0) target = $region17
  $region16: #{up_forward.1} parent=0 // pred_region
    _
  $region17: #{up_forward.1} parent=0 // pred_fallthru
    _
  // Predicated region
  $region18: #{up_forward.1} parent=0 // pred_check
    _
  $region19: #{up_forward.1} parent=0 // pred_check_branch
    %26 = sbr.rel (0) target = $region21
  $region20: #{up_forward.1} parent=0 // pred_region
    _
  $region21: #{up_forward.1} parent=0 // pred_fallthru
    _
  // Predicated region
  $region22: #{up_forward.1} parent=0 // pred_check
    _
  $region23: #{up_forward.1} parent=0 // pred_check_branch
    %28 = sbr.rel (0) target = $region25
  $region24: #{up_forward.1} parent=0 // pred_region
    _
  $region25: #{up_forward.1} parent=0 // pred_fallthru
    _
  // Predicated region
  $region26: #{up_forward.1} parent=0 // pred_check
    _
  $region27: #{up_forward.1} parent=0 // pred_check_branch
    %30 = sbr.rel (0) target = $region29
  $region28: #{up_forward.1} parent=0 // pred_region
    _
  $region29: #{up_forward.1} parent=0 // pred_fallthru
    _
  // Predicated region
  $region30: #{up_forward.1} parent=0 // pred_check
    _
  $region31: #{up_forward.1} parent=0 // pred_check_branch
    %32 = sbr.rel (0) target = $region33
  $region32: #{up_forward.1} parent=0 // pred_region
    _
  $region33: #{up_forward.1} parent=0 // pred_fallthru
    _
  // Predicated region
  $region34: #{up_forward.1} parent=0 // pred_check
    _
  $region35: #{up_forward.1} parent=0 // pred_check_branch
    %34 = sbr.rel (0) target = $region37
  $region36: #{up_forward.1} parent=0 // pred_region
    _
  $region37: #{up_forward.1} parent=0 // pred_fallthru
    _
  // Predicated region
  $region38: #{up_forward.1} parent=0 // pred_check
    _
  $region39: #{up_forward.1} parent=0 // pred_check_branch
    %36 = sbr.rel (0) target = $region41
  $region40: #{up_forward.1} parent=0 // pred_region
    _
  $region41: #{up_forward.1} parent=0 // pred_fallthru
    _
  // Predicated region
  $region42: #{up_forward.1} parent=0 // pred_check
    _
  $region43: #{up_forward.1} parent=0 // pred_check_branch
    %38 = sbr.rel (0) target = $region45
  $region44: #{up_forward.1} parent=0 // pred_region
    _
  $region45: #{up_forward.1} parent=0 // pred_fallthru
    _
  // Predicated region
  $region46: #{up_forward.1} parent=0 // pred_check
    _
  $region47: #{up_forward.1} parent=0 // pred_check_branch
    %40 = sbr.rel (0) target = $region49
  $region48: #{up_forward.1} parent=0 // pred_region
    _
  $region49: #{up_forward.1} parent=0 // pred_fallthru
    _
  %v42 = vld [vmem:[%s2] sm:$0xff]
  %v43 = vld [vmem:[%s2 + $0x8] sm:$0xff]
  %v44 = vld [vmem:[%s2 + $0x10] sm:$0x3]
  %v45 = vld [vmem:[%s0] sm:$0xff]
  %vm46 = vcmask 64512
  %v48 = vsel %vm46, %v42, 0
  %v51 = vsel %vm46, %v43, 0
  %v54 = vsel %vm46, %v44, 0
  %56 = vmatprep.subr.mxu0 0.0
  %57 = vmatpush1.msra.mxu0 %v45
  %58 = vmatprep.subr.mxu0 0.0
  %59 = vmatpush1.msra.mxu0 0.0
  %60 = vmatprep.subr.mxu0 0.0
  %61 = vmatpush1.msra.mxu0 0.0
  %62 = vmatprep.subr.mxu0 0.0
  %63 = vmatpush1.msra.mxu0 0.0
  %64 = vmatprep.subr.mxu0 0.0
  %65 = vmatpush1.msra.mxu0 0.0
  %66 = vmatprep.subr.mxu0 0.0
  %67 = vmatpush1.msra.mxu0 0.0
  %68 = vmatprep.subr.mxu0 0.0
  %69 = vmatpush1.msra.mxu0 0.0
  %70 = vmatprep.subr.mxu0 0.0
  %71 = vmatpush1.msra.mxu0 0.0
  %72 = vmatprep.subr.mxu0 0.0
  %73 = vmatpush1.msra.mxu0 0.0
  %74 = vmatprep.subr.mxu0 0.0
  %75 = vmatpush1.msra.mxu0 0.0
  %76 = vmatprep.subr.mxu0 0.0
  %77 = vmatpush1.msra.mxu0 0.0
  %78 = vmatprep.subr.mxu0 0.0
  %79 = vmatpush1.msra.mxu0 0.0
  %80 = vmatprep.subr.mxu0 0.0
  %81 = vmatpush1.msra.mxu0 0.0
  %82 = vmatprep.subr.mxu0 0.0
  %83 = vmatpush1.msra.mxu0 0.0
  %84 = vmatprep.subr.mxu0 0.0
  %85 = vmatpush1.msra.mxu0 0.0
  %86 = vmatprep.subr.mxu0 0.0
  %87 = vmatpush1.msra.mxu0 0.0
  %88 = vmatprep.subr.mxu0 0.0
  %89 = vmatpush1.msra.mxu0 0.0
  %90 = vmatprep.subr.mxu0 0.0
  %91 = vmatpush1.msra.mxu0 0.0
  %92 = vmatprep.subr.mxu0 0.0
  %93 = vmatpush1.msra.mxu0 0.0
  %94 = vmatprep.subr.mxu0 0.0
  %95 = vmatpush1.msra.mxu0 0.0
  %96 = vmatprep.subr.mxu0 0.0
  %97 = vmatpush1.msra.mxu0 0.0
  %98 = vmatprep.subr.mxu0 0.0
  %99 = vmatpush1.msra.mxu0 0.0
  %100 = vmatprep.subr.mxu0 0.0
  %101 = vmatpush1.msra.mxu0 0.0
  %102 = vmatprep.subr.mxu0 0.0
  %103 = vmatpush1.msra.mxu0 0.0
  %104 = vmatprep.subr.mxu0 0.0
  %105 = vmatpush1.msra.mxu0 0.0
  %106 = vmatprep.subr.mxu0 0.0
  %107 = vmatpush1.msra.mxu0 0.0
  %108 = vmatprep.subr.mxu0 0.0
  %109 = vmatpush1.msra.mxu0 0.0
  %110 = vmatprep.subr.mxu0 0.0
  %111 = vmatpush1.msra.mxu0 0.0
  %112 = vmatprep.subr.mxu0 0.0
  %113 = vmatpush1.msra.mxu0 0.0
  %114 = vmatprep.subr.mxu0 0.0
  %115 = vmatpush1.msra.mxu0 0.0
  %116 = vmatprep.subr.mxu0 0.0
  %117 = vmatpush1.msra.mxu0 0.0
  %118 = vmatprep.subr.mxu0 0.0
  %119 = vmatpush1.msra.mxu0 0.0
  %120 = vmatprep.mubr.f32.mxu0 0.0
  %121 = vmatmul.mubr.f32.gmra.mrb[0].mxu0 %v48
  %v122 = vpop.f32.mrb[0].mxu0
  %v123 = vadd.f32 0.0, %v122
  %v124 = vpop.f32.mrb[0].mxu0
  %125 = vmatprep.mubr.f32.mxu0 0.0
  %126 = vmatmul.mubr.f32.gmra.mrb[0].mxu0 %v51
  %v127 = vpop.f32.mrb[0].mxu0
  %v128 = vadd.f32 0.0, %v127
  %v129 = vpop.f32.mrb[0].mxu0
  %130 = vmatprep.mubr.f32.mxu0 0.0
  %131 = vmatmul.mubr.f32.gmra.mrb[0].mxu0 %v54
  %v132 = vpop.f32.mrb[0].mxu0
  %v133 = vadd.f32 0.0, %v132
  %v134 = vpop.f32.mrb[0].mxu0
  %135 = vdwg.mxu0
  %vm136 = vcmask 261120
  %137 = vst.msk [vmem:[#allocation2] sm:$0xff] %vm136, %v123
  %138 = vst.msk [vmem:[#allocation2 + $0x8] sm:$0xff] %vm136, %v128
  %vm139 = vcmask 254976
  %140 = vst.msk [vmem:[#allocation2 + $0x10] sm:$0x3] %vm139, %v133
  %v141 = vld [vmem:[%s2] sm:$0xff]
  %v142 = vld [vmem:[%s2 + $0x8] sm:$0xff]
  %v143 = vld [vmem:[%s2 + $0x10] sm:$0x3]
  %s144 = scalar_lea.vmem %s0, 8
  %v145 = vld [vmem:[%s144] sm:$0xff]
  %v147 = vsel %vm46, %v141, 0
  %v150 = vsel %vm46, %v142, 0
  %v153 = vsel %vm46, %v143, 0
  %155 = vmatprep.subr.mxu0 0.0
  %156 = vmatpush1.msra.mxu0 %v145
  %157 = vmatprep.subr.mxu0 0.0
  %158 = vmatpush1.msra.mxu0 0.0
  %159 = vmatprep.subr.mxu0 0.0
  %160 = vmatpush1.msra.mxu0 0.0
  %161 = vmatprep.subr.mxu0 0.0
  %162 = vmatpush1.msra.mxu0 0.0
  %163 = vmatprep.subr.mxu0 0.0
  %164 = vmatpush1.msra.mxu0 0.0
  %165 = vmatprep.subr.mxu0 0.0
  %166 = vmatpush1.msra.mxu0 0.0
  %167 = vmatprep.subr.mxu0 0.0
  %168 = vmatpush1.msra.mxu0 0.0
  %169 = vmatprep.subr.mxu0 0.0
  %170 = vmatpush1.msra.mxu0 0.0
  %171 = vmatprep.subr.mxu0 0.0
  %172 = vmatpush1.msra.mxu0 0.0
  %173 = vmatprep.subr.mxu0 0.0
  %174 = vmatpush1.msra.mxu0 0.0
  %175 = vmatprep.subr.mxu0 0.0
  %176 = vmatpush1.msra.mxu0 0.0
  %177 = vmatprep.subr.mxu0 0.0
  %178 = vmatpush1.msra.mxu0 0.0
  %179 = vmatprep.subr.mxu0 0.0
  %180 = vmatpush1.msra.mxu0 0.0
  %181 = vmatprep.subr.mxu0 0.0
  %182 = vmatpush1.msra.mxu0 0.0
  %183 = vmatprep.subr.mxu0 0.0
  %184 = vmatpush1.msra.mxu0 0.0
  %185 = vmatprep.subr.mxu0 0.0
  %186 = vmatpush1.msra.mxu0 0.0
  %187 = vmatprep.subr.mxu0 0.0
  %188 = vmatpush1.msra.mxu0 0.0
  %189 = vmatprep.subr.mxu0 0.0
  %190 = vmatpush1.msra.mxu0 0.0
  %191 = vmatprep.subr.mxu0 0.0
  %192 = vmatpush1.msra.mxu0 0.0
  %193 = vmatprep.subr.mxu0 0.0
  %194 = vmatpush1.msra.mxu0 0.0
  %195 = vmatprep.subr.mxu0 0.0
  %196 = vmatpush1.msra.mxu0 0.0
  %197 = vmatprep.subr.mxu0 0.0
  %198 = vmatpush1.msra.mxu0 0.0
  %199 = vmatprep.subr.mxu0 0.0
  %200 = vmatpush1.msra.mxu0 0.0
  %201 = vmatprep.subr.mxu0 0.0
  %202 = vmatpush1.msra.mxu0 0.0
  %203 = vmatprep.subr.mxu0 0.0
  %204 = vmatpush1.msra.mxu0 0.0
  %205 = vmatprep.subr.mxu0 0.0
  %206 = vmatpush1.msra.mxu0 0.0
  %207 = vmatprep.subr.mxu0 0.0
  %208 = vmatpush1.msra.mxu0 0.0
  %209 = vmatprep.subr.mxu0 0.0
  %210 = vmatpush1.msra.mxu0 0.0
  %211 = vmatprep.subr.mxu0 0.0
  %212 = vmatpush1.msra.mxu0 0.0
  %213 = vmatprep.subr.mxu0 0.0
  %214 = vmatpush1.msra.mxu0 0.0
  %215 = vmatprep.subr.mxu0 0.0
  %216 = vmatpush1.msra.mxu0 0.0
  %217 = vmatprep.subr.mxu0 0.0
  %218 = vmatpush1.msra.mxu0 0.0
  %219 = vmatprep.mubr.f32.mxu0 0.0
  %220 = vmatmul.mubr.f32.gmra.mrb[0].mxu0 %v147
  %v221 = vpop.f32.mrb[0].mxu0
  %v222 = vadd.f32 0.0, %v221
  %v223 = vpop.f32.mrb[0].mxu0
  %224 = vmatprep.mubr.f32.mxu0 0.0
  %225 = vmatmul.mubr.f32.gmra.mrb[0].mxu0 %v150
  %v226 = vpop.f32.mrb[0].mxu0
  %v227 = vadd.f32 0.0, %v226
  %v228 = vpop.f32.mrb[0].mxu0
  %229 = vmatprep.mubr.f32.mxu0 0.0
  %230 = vmatmul.mubr.f32.gmra.mrb[0].mxu0 %v153
  %v231 = vpop.f32.mrb[0].mxu0
  %v232 = vadd.f32 0.0, %v231
  %v233 = vpop.f32.mrb[0].mxu0
  %234 = vdwg.mxu0
  %s235 = scalar_lea.vmem [#allocation2], 24
  %236 = vst.msk [vmem:[%s235] sm:$0xff] %vm136, %v222
  %237 = vst.msk [vmem:[%s235 + $0x8] sm:$0xff] %vm136, %v227
  %238 = vst.msk [vmem:[%s235 + $0x10] sm:$0x3] %vm139, %v232
  %vm239 = vcmask 516096
  %240 = vst.msk [vmem:[#allocation3] sm:$0x1] %vm239, 0.0
  %241 = vst.msk [vmem:[#allocation3 + $0x18] sm:$0x1] %vm239, 0.0
  %242 = vst.msk [vmem:[#allocation3 + $0x11] sm:$0x1] %vm239, 0.0
  %243 = vst.msk [vmem:[#allocation3 + $0x29] sm:$0x1] %vm239, 0.0
  %v244 = vld [vmem:[%s1] sm:$0xff]
  %v245 = vld [vmem:[%s1 + $0x8] sm:$0xff]
  %v246 = vld [vmem:[%s1 + $0x10] sm:$0xff]
  %v247 = vld [vmem:[%s1 + $0x18] sm:$0xff]
  %vm248 = vcmask 523264
  %249 = vst.msk [vmem:[#allocation3 + $0x1] sm:$0xff] %vm248, %v244
  %250 = vst.msk [vmem:[#allocation3 + $0x9] sm:$0xff] %vm248, %v245
  %251 = vst.msk [vmem:[#allocation3 + $0x19] sm:$0xff] %vm248, %v246
  %252 = vst.msk [vmem:[#allocation3 + $0x21] sm:$0xff] %vm248, %v247
  %v253 = vld [vmem:[#allocation3] sm:$0xff]
  %v254 = vld [vmem:[#allocation3 + $0x8] sm:$0xff]
  %v255 = vpack.c.bf16 %v254, %v253
  %v256 = vld [vmem:[%s4] sm:$0xf]
  %v257 = vld [vmem:[%s4 + $0x4] sm:$0xf]
  %v258 = vld [vmem:[%s4 + $0x8] sm:$0xf]
  %v259 = vld [vmem:[%s4 + $0xc] sm:$0xf]
  %v260 = vld [vmem:[%s4 + $0x10] sm:$0xf]
  %v261 = vld [vmem:[%s4 + $0x14] sm:$0xf]
  %v262 = vld [vmem:[%s4 + $0x18] sm:$0xf]
  %v263 = vld [vmem:[%s4 + $0x1c] sm:$0xf]
  %v264 = vld [vmem:[#allocation3 + $0x1] sm:$0xff]
  %v265 = vld [vmem:[#allocation3 + $0x9] sm:$0xff]
  %v266 = vpack.c.bf16 %v265, %v264
  %s267 = scalar_lea.vmem %s4, 32
  %v268 = vld [vmem:[%s267] sm:$0xf]
  %v269 = vld [vmem:[%s267 + $0x4] sm:$0xf]
  %v270 = vld [vmem:[%s267 + $0x8] sm:$0xf]
  %v271 = vld [vmem:[%s267 + $0xc] sm:$0xf]
  %v272 = vld [vmem:[%s267 + $0x10] sm:$0xf]
  %v273 = vld [vmem:[%s267 + $0x14] sm:$0xf]
  %v274 = vld [vmem:[%s267 + $0x18] sm:$0xf]
  %v275 = vld [vmem:[%s267 + $0x1c] sm:$0xf]
  %v284 = vunpack.c.l.b16 %v268
  %v285 = vunpack.c.l.b16 %v269
  %v286 = vunpack.c.l.b16 %v270
  %v287 = vunpack.c.l.b16 %v271
  %v288 = vunpack.c.l.b16 %v272
  %v289 = vunpack.c.l.b16 %v273
  %v290 = vunpack.c.l.b16 %v274
  %v291 = vunpack.c.l.b16 %v275
  %v292 = vpack.c.b16 %v285, %v284
  %v293 = vpack.c.b16 %v287, %v286
  %v294 = vpack.c.b16 %v289, %v288
  %v295 = vpack.c.b16 %v291, %v290
  %v301 = vsel %vm248, %v266, 0
  %303 = vmatprep.subr.bf16.mxu0 0
  %304 = vmatpush1.bf16.msra.mxu0 %v292
  %305 = vmatprep.subr.bf16.mxu0 0
  %306 = vmatpush1.bf16.msra.mxu0 %v293
  %307 = vmatprep.subr.bf16.mxu0 0
  %308 = vmatpush1.bf16.msra.mxu0 %v294
  %309 = vmatprep.subr.bf16.mxu0 0
  %310 = vmatpush1.bf16.msra.mxu0 %v295
  %311 = vmatprep.subr.bf16.mxu0 0
  %312 = vmatpush1.bf16.msra.mxu0 0
  %313 = vmatprep.subr.bf16.mxu0 0
  %314 = vmatpush1.bf16.msra.mxu0 0
  %315 = vmatprep.subr.bf16.mxu0 0
  %316 = vmatpush1.bf16.msra.mxu0 0
  %317 = vmatprep.subr.bf16.mxu0 0
  %318 = vmatpush1.bf16.msra.mxu0 0
  %319 = vmatprep.subr.bf16.mxu0 0
  %320 = vmatpush1.bf16.msra.mxu0 0
  %321 = vmatprep.subr.bf16.mxu0 0
  %322 = vmatpush1.bf16.msra.mxu0 0
  %323 = vmatprep.subr.bf16.mxu0 0
  %324 = vmatpush1.bf16.msra.mxu0 0
  %325 = vmatprep.subr.bf16.mxu0 0
  %326 = vmatpush1.bf16.msra.mxu0 0
  %327 = vmatprep.subr.bf16.mxu0 0
  %328 = vmatpush1.bf16.msra.mxu0 0
  %329 = vmatprep.subr.bf16.mxu0 0
  %330 = vmatpush1.bf16.msra.mxu0 0
  %331 = vmatprep.subr.bf16.mxu0 0
  %332 = vmatpush1.bf16.msra.mxu0 0
  %333 = vmatprep.subr.bf16.mxu0 0
  %334 = vmatpush1.bf16.msra.mxu0 0
  %335 = vmatprep.mubr.bf16.mxu0 0
  %336 = vmatmul.mubr.bf16.gmra.mrb[0].mxu0 %v301
  %v337 = vpop.f32.mrb[0].mxu0
  %v338 = vadd.f32 0.0, %v337
  %v339 = vpop.f32.mrb[0].mxu0
  %v340 = vpop.f32.mrb[0].mxu0
  %v341 = vadd.f32 0.0, %v340
  %v342 = vpop.f32.mrb[0].mxu0
  %343 = vdwg.mxu0
  %v352 = vunpack.c.l.b16 %v256
  %v353 = vunpack.c.l.b16 %v257
  %v354 = vunpack.c.l.b16 %v258
  %v355 = vunpack.c.l.b16 %v259
  %v356 = vunpack.c.l.b16 %v260
  %v357 = vunpack.c.l.b16 %v261
  %v358 = vunpack.c.l.b16 %v262
  %v359 = vunpack.c.l.b16 %v263
  %v360 = vpack.c.b16 %v353, %v352
  %v361 = vpack.c.b16 %v355, %v354
  %v362 = vpack.c.b16 %v357, %v356
  %v363 = vpack.c.b16 %v359, %v358
  %v369 = vsel %vm248, %v255, 0
  %371 = vmatprep.subr.bf16.mxu0 0
  %372 = vmatpush1.bf16.msra.mxu0 %v360
  %373 = vmatprep.subr.bf16.mxu0 0
  %374 = vmatpush1.bf16.msra.mxu0 %v361
  %375 = vmatprep.subr.bf16.mxu0 0
  %376 = vmatpush1.bf16.msra.mxu0 %v362
  %377 = vmatprep.subr.bf16.mxu0 0
  %378 = vmatpush1.bf16.msra.mxu0 %v363
  %379 = vmatprep.subr.bf16.mxu0 0
  %380 = vmatpush1.bf16.msra.mxu0 0
  %381 = vmatprep.subr.bf16.mxu0 0
  %382 = vmatpush1.bf16.msra.mxu0 0
  %383 = vmatprep.subr.bf16.mxu0 0
  %384 = vmatpush1.bf16.msra.mxu0 0
  %385 = vmatprep.subr.bf16.mxu0 0
  %386 = vmatpush1.bf16.msra.mxu0 0
  %387 = vmatprep.subr.bf16.mxu0 0
  %388 = vmatpush1.bf16.msra.mxu0 0
  %389 = vmatprep.subr.bf16.mxu0 0
  %390 = vmatpush1.bf16.msra.mxu0 0
  %391 = vmatprep.subr.bf16.mxu0 0
  %392 = vmatpush1.bf16.msra.mxu0 0
  %393 = vmatprep.subr.bf16.mxu0 0
  %394 = vmatpush1.bf16.msra.mxu0 0
  %395 = vmatprep.subr.bf16.mxu0 0
  %396 = vmatpush1.bf16.msra.mxu0 0
  %397 = vmatprep.subr.bf16.mxu0 0
  %398 = vmatpush1.bf16.msra.mxu0 0
  %399 = vmatprep.subr.bf16.mxu0 0
  %400 = vmatpush1.bf16.msra.mxu0 0
  %401 = vmatprep.subr.bf16.mxu0 0
  %402 = vmatpush1.bf16.msra.mxu0 0
  %403 = vmatprep.mubr.bf16.mxu0 0
  %404 = vmatmul.mubr.bf16.gmra.mrb[0].mxu0 %v369
  %v405 = vpop.f32.mrb[0].mxu0
  %v406 = vadd.f32 %v338, %v405
  %v407 = vpop.f32.mrb[0].mxu0
  %v408 = vpop.f32.mrb[0].mxu0
  %v409 = vadd.f32 %v341, %v408
  %v410 = vpop.f32.mrb[0].mxu0
  %411 = vdwg.mxu0
  %v412 = vld [vmem:[#allocation3 + $0x2] sm:$0xff]
  %v413 = vld [vmem:[#allocation3 + $0xa] sm:$0xff]
  %v414 = vpack.c.bf16 %v413, %v412
  %s415 = scalar_lea.vmem %s4, 64
  %v416 = vld [vmem:[%s415] sm:$0xf]
  %v417 = vld [vmem:[%s415 + $0x4] sm:$0xf]
  %v418 = vld [vmem:[%s415 + $0x8] sm:$0xf]
  %v419 = vld [vmem:[%s415 + $0xc] sm:$0xf]
  %v420 = vld [vmem:[%s415 + $0x10] sm:$0xf]
  %v421 = vld [vmem:[%s415 + $0x14] sm:$0xf]
  %v422 = vld [vmem:[%s415 + $0x18] sm:$0xf]
  %v423 = vld [vmem:[%s415 + $0x1c] sm:$0xf]
  %v432 = vunpack.c.l.b16 %v416
  %v433 = vunpack.c.l.b16 %v417
  %v434 = vunpack.c.l.b16 %v418
  %v435 = vunpack.c.l.b16 %v419
  %v436 = vunpack.c.l.b16 %v420
  %v437 = vunpack.c.l.b16 %v421
  %v438 = vunpack.c.l.b16 %v422
  %v439 = vunpack.c.l.b16 %v423
  %v440 = vpack.c.b16 %v433, %v432
  %v441 = vpack.c.b16 %v435, %v434
  %v442 = vpack.c.b16 %v437, %v436
  %v443 = vpack.c.b16 %v439, %v438
  %v449 = vsel %vm248, %v414, 0
  %451 = vmatprep.subr.bf16.mxu0 0
  %452 = vmatpush1.bf16.msra.mxu0 %v440
  %453 = vmatprep.subr.bf16.mxu0 0
  %454 = vmatpush1.bf16.msra.mxu0 %v441
  %455 = vmatprep.subr.bf16.mxu0 0
  %456 = vmatpush1.bf16.msra.mxu0 %v442
  %457 = vmatprep.subr.bf16.mxu0 0
  %458 = vmatpush1.bf16.msra.mxu0 %v443
  %459 = vmatprep.subr.bf16.mxu0 0
  %460 = vmatpush1.bf16.msra.mxu0 0
  %461 = vmatprep.subr.bf16.mxu0 0
  %462 = vmatpush1.bf16.msra.mxu0 0
  %463 = vmatprep.subr.bf16.mxu0 0
  %464 = vmatpush1.bf16.msra.mxu0 0
  %465 = vmatprep.subr.bf16.mxu0 0
  %466 = vmatpush1.bf16.msra.mxu0 0
  %467 = vmatprep.subr.bf16.mxu0 0
  %468 = vmatpush1.bf16.msra.mxu0 0
  %469 = vmatprep.subr.bf16.mxu0 0
  %470 = vmatpush1.bf16.msra.mxu0 0
  %471 = vmatprep.subr.bf16.mxu0 0
  %472 = vmatpush1.bf16.msra.mxu0 0
  %473 = vmatprep.subr.bf16.mxu0 0
  %474 = vmatpush1.bf16.msra.mxu0 0
  %475 = vmatprep.subr.bf16.mxu0 0
  %476 = vmatpush1.bf16.msra.mxu0 0
  %477 = vmatprep.subr.bf16.mxu0 0
  %478 = vmatpush1.bf16.msra.mxu0 0
  %479 = vmatprep.subr.bf16.mxu0 0
  %480 = vmatpush1.bf16.msra.mxu0 0
  %481 = vmatprep.subr.bf16.mxu0 0
  %482 = vmatpush1.bf16.msra.mxu0 0
  %483 = vmatprep.mubr.bf16.mxu0 0
  %484 = vmatmul.mubr.bf16.gmra.mrb[0].mxu0 %v449
  %v485 = vpop.f32.mrb[0].mxu0
  %v486 = vadd.f32 0.0, %v485
  %v487 = vpop.f32.mrb[0].mxu0
  %v488 = vpop.f32.mrb[0].mxu0
  %v489 = vadd.f32 0.0, %v488
  %v490 = vpop.f32.mrb[0].mxu0
  %491 = vdwg.mxu0
  %v492 = vadd.f32 %v406, %v486
  %v493 = vadd.f32 %v409, %v489
  %v494 = vld [vmem:[#allocation2] sm:$0xff]
  %v495 = vld [vmem:[#allocation2 + $0x8] sm:$0xff]
  %v496 = vpack.c.bf16 %v495, %v494
  %v497 = vld [vmem:[%s3] sm:$0xf]
  %v498 = vld [vmem:[%s3 + $0x4] sm:$0xf]
  %v499 = vld [vmem:[%s3 + $0x8] sm:$0xf]
  %v500 = vld [vmem:[%s3 + $0xc] sm:$0xf]
  %v501 = vld [vmem:[#allocation2 + $0x1] sm:$0xff]
  %v502 = vld [vmem:[#allocation2 + $0x9] sm:$0xff]
  %v503 = vpack.c.bf16 %v502, %v501
  %s504 = scalar_lea.vmem %s3, 16
  %v505 = vld [vmem:[%s504] sm:$0xf]
  %v506 = vld [vmem:[%s504 + $0x4] sm:$0xf]
  %v507 = vld [vmem:[%s504 + $0x8] sm:$0xf]
  %v508 = vld [vmem:[%s504 + $0xc] sm:$0xf]
  %v513 = vunpack.c.l.b16 %v505
  %v514 = vunpack.c.l.b16 %v506
  %v515 = vunpack.c.l.b16 %v507
  %v516 = vunpack.c.l.b16 %v508
  %v517 = vpack.c.b16 %v514, %v513
  %v518 = vpack.c.b16 %v516, %v515
  %v522 = vsel %vm136, %v503, 0
  %524 = vmatprep.subr.bf16.mxu0 0
  %525 = vmatpush1.bf16.msra.mxu0 %v517
  %526 = vmatprep.subr.bf16.mxu0 0
  %527 = vmatpush1.bf16.msra.mxu0 %v518
  %528 = vmatprep.subr.bf16.mxu0 0
  %529 = vmatpush1.bf16.msra.mxu0 0
  %530 = vmatprep.subr.bf16.mxu0 0
  %531 = vmatpush1.bf16.msra.mxu0 0
  %532 = vmatprep.subr.bf16.mxu0 0
  %533 = vmatpush1.bf16.msra.mxu0 0
  %534 = vmatprep.subr.bf16.mxu0 0
  %535 = vmatpush1.bf16.msra.mxu0 0
  %536 = vmatprep.subr.bf16.mxu0 0
  %537 = vmatpush1.bf16.msra.mxu0 0
  %538 = vmatprep.subr.bf16.mxu0 0
  %539 = vmatpush1.bf16.msra.mxu0 0
  %540 = vmatprep.subr.bf16.mxu0 0
  %541 = vmatpush1.bf16.msra.mxu0 0
  %542 = vmatprep.subr.bf16.mxu0 0
  %543 = vmatpush1.bf16.msra.mxu0 0
  %544 = vmatprep.subr.bf16.mxu0 0
  %545 = vmatpush1.bf16.msra.mxu0 0
  %546 = vmatprep.subr.bf16.mxu0 0
  %547 = vmatpush1.bf16.msra.mxu0 0
  %548 = vmatprep.subr.bf16.mxu0 0
  %549 = vmatpush1.bf16.msra.mxu0 0
  %550 = vmatprep.subr.bf16.mxu0 0
  %551 = vmatpush1.bf16.msra.mxu0 0
  %552 = vmatprep.subr.bf16.mxu0 0
  %553 = vmatpush1.bf16.msra.mxu0 0
  %554 = vmatprep.subr.bf16.mxu0 0
  %555 = vmatpush1.bf16.msra.mxu0 0
  %556 = vmatprep.mubr.bf16.mxu0 0
  %557 = vmatmul.mubr.bf16.gmra.mrb[0].mxu0 %v522
  %v558 = vpop.f32.mrb[0].mxu0
  %v559 = vadd.f32 0.0, %v558
  %v560 = vpop.f32.mrb[0].mxu0
  %v561 = vpop.f32.mrb[0].mxu0
  %v562 = vadd.f32 0.0, %v561
  %v563 = vpop.f32.mrb[0].mxu0
  %564 = vdwg.mxu0
  %v569 = vunpack.c.l.b16 %v497
  %v570 = vunpack.c.l.b16 %v498
  %v571 = vunpack.c.l.b16 %v499
  %v572 = vunpack.c.l.b16 %v500
  %v573 = vpack.c.b16 %v570, %v569
  %v574 = vpack.c.b16 %v572, %v571
  %v578 = vsel %vm136, %v496, 0
  %580 = vmatprep.subr.bf16.mxu0 0
  %581 = vmatpush1.bf16.msra.mxu0 %v573
  %582 = vmatprep.subr.bf16.mxu0 0
  %583 = vmatpush1.bf16.msra.mxu0 %v574
  %584 = vmatprep.subr.bf16.mxu0 0
  %585 = vmatpush1.bf16.msra.mxu0 0
  %586 = vmatprep.subr.bf16.mxu0 0
  %587 = vmatpush1.bf16.msra.mxu0 0
  %588 = vmatprep.subr.bf16.mxu0 0
  %589 = vmatpush1.bf16.msra.mxu0 0
  %590 = vmatprep.subr.bf16.mxu0 0
  %591 = vmatpush1.bf16.msra.mxu0 0
  %592 = vmatprep.subr.bf16.mxu0 0
  %593 = vmatpush1.bf16.msra.mxu0 0
  %594 = vmatprep.subr.bf16.mxu0 0
  %595 = vmatpush1.bf16.msra.mxu0 0
  %596 = vmatprep.subr.bf16.mxu0 0
  %597 = vmatpush1.bf16.msra.mxu0 0
  %598 = vmatprep.subr.bf16.mxu0 0
  %599 = vmatpush1.bf16.msra.mxu0 0
  %600 = vmatprep.subr.bf16.mxu0 0
  %601 = vmatpush1.bf16.msra.mxu0 0
  %602 = vmatprep.subr.bf16.mxu0 0
  %603 = vmatpush1.bf16.msra.mxu0 0
  %604 = vmatprep.subr.bf16.mxu0 0
  %605 = vmatpush1.bf16.msra.mxu0 0
  %606 = vmatprep.subr.bf16.mxu0 0
  %607 = vmatpush1.bf16.msra.mxu0 0
  %608 = vmatprep.subr.bf16.mxu0 0
  %609 = vmatpush1.bf16.msra.mxu0 0
  %610 = vmatprep.subr.bf16.mxu0 0
  %611 = vmatpush1.bf16.msra.mxu0 0
  %612 = vmatprep.mubr.bf16.mxu0 0
  %613 = vmatmul.mubr.bf16.gmra.mrb[0].mxu0 %v578
  %v614 = vpop.f32.mrb[0].mxu0
  %v615 = vadd.f32 %v559, %v614
  %v616 = vpop.f32.mrb[0].mxu0
  %v617 = vpop.f32.mrb[0].mxu0
  %v618 = vadd.f32 %v562, %v617
  %v619 = vpop.f32.mrb[0].mxu0
  %620 = vdwg.mxu0
  %v621 = vld [vmem:[#allocation2 + $0x2] sm:$0xff]
  %v622 = vld [vmem:[#allocation2 + $0xa] sm:$0xff]
  %v623 = vpack.c.bf16 %v622, %v621
  %s624 = scalar_lea.vmem %s3, 32
  %v625 = vld [vmem:[%s624] sm:$0xf]
  %v626 = vld [vmem:[%s624 + $0x4] sm:$0xf]
  %v627 = vld [vmem:[%s624 + $0x8] sm:$0xf]
  %v628 = vld [vmem:[%s624 + $0xc] sm:$0xf]
  %v633 = vunpack.c.l.b16 %v625
  %v634 = vunpack.c.l.b16 %v626
  %v635 = vunpack.c.l.b16 %v627
  %v636 = vunpack.c.l.b16 %v628
  %v637 = vpack.c.b16 %v634, %v633
  %v638 = vpack.c.b16 %v636, %v635
  %v642 = vsel %vm136, %v623, 0
  %644 = vmatprep.subr.bf16.mxu0 0
  %645 = vmatpush1.bf16.msra.mxu0 %v637
  %646 = vmatprep.subr.bf16.mxu0 0
  %647 = vmatpush1.bf16.msra.mxu0 %v638
  %648 = vmatprep.subr.bf16.mxu0 0
  %649 = vmatpush1.bf16.msra.mxu0 0
  %650 = vmatprep.subr.bf16.mxu0 0
  %651 = vmatpush1.bf16.msra.mxu0 0
  %652 = vmatprep.subr.bf16.mxu0 0
  %653 = vmatpush1.bf16.msra.mxu0 0
  %654 = vmatprep.subr.bf16.mxu0 0
  %655 = vmatpush1.bf16.msra.mxu0 0
  %656 = vmatprep.subr.bf16.mxu0 0
  %657 = vmatpush1.bf16.msra.mxu0 0
  %658 = vmatprep.subr.bf16.mxu0 0
  %659 = vmatpush1.bf16.msra.mxu0 0
  %660 = vmatprep.subr.bf16.mxu0 0
  %661 = vmatpush1.bf16.msra.mxu0 0
  %662 = vmatprep.subr.bf16.mxu0 0
  %663 = vmatpush1.bf16.msra.mxu0 0
  %664 = vmatprep.subr.bf16.mxu0 0
  %665 = vmatpush1.bf16.msra.mxu0 0
  %666 = vmatprep.subr.bf16.mxu0 0
  %667 = vmatpush1.bf16.msra.mxu0 0
  %668 = vmatprep.subr.bf16.mxu0 0
  %669 = vmatpush1.bf16.msra.mxu0 0
  %670 = vmatprep.subr.bf16.mxu0 0
  %671 = vmatpush1.bf16.msra.mxu0 0
  %672 = vmatprep.subr.bf16.mxu0 0
  %673 = vmatpush1.bf16.msra.mxu0 0
  %674 = vmatprep.subr.bf16.mxu0 0
  %675 = vmatpush1.bf16.msra.mxu0 0
  %676 = vmatprep.mubr.bf16.mxu0 0
  %677 = vmatmul.mubr.bf16.gmra.mrb[0].mxu0 %v642
  %v678 = vpop.f32.mrb[0].mxu0
  %v679 = vadd.f32 0.0, %v678
  %v680 = vpop.f32.mrb[0].mxu0
  %v681 = vpop.f32.mrb[0].mxu0
  %v682 = vadd.f32 0.0, %v681
  %v683 = vpop.f32.mrb[0].mxu0
  %684 = vdwg.mxu0
  %v685 = vadd.f32 %v615, %v679
  %v686 = vadd.f32 %v618, %v682
  %v687 = vadd.f32 %v492, %v685
  %v688 = vadd.f32 %v493, %v686
  %s689 = scalar_lea.vmem [#allocation3], 24
  %v690 = vld [vmem:[%s689] sm:$0xff]
  %v691 = vld [vmem:[%s689 + $0x8] sm:$0xff]
  %v692 = vpack.c.bf16 %v691, %v690
  %v693 = vld [vmem:[%s689 + $0x1] sm:$0xff]
  %v694 = vld [vmem:[%s689 + $0x9] sm:$0xff]
  %v695 = vpack.c.bf16 %v694, %v693
  %v697 = vsel %vm248, %v695, 0
  %699 = vmatprep.subr.bf16.mxu0 0
  %700 = vmatpush1.bf16.msra.mxu0 %v292
  %701 = vmatprep.subr.bf16.mxu0 0
  %702 = vmatpush1.bf16.msra.mxu0 %v293
  %703 = vmatprep.subr.bf16.mxu0 0
  %704 = vmatpush1.bf16.msra.mxu0 %v294
  %705 = vmatprep.subr.bf16.mxu0 0
  %706 = vmatpush1.bf16.msra.mxu0 %v295
  %707 = vmatprep.subr.bf16.mxu0 0
  %708 = vmatpush1.bf16.msra.mxu0 0
  %709 = vmatprep.subr.bf16.mxu0 0
  %710 = vmatpush1.bf16.msra.mxu0 0
  %711 = vmatprep.subr.bf16.mxu0 0
  %712 = vmatpush1.bf16.msra.mxu0 0
  %713 = vmatprep.subr.bf16.mxu0 0
  %714 = vmatpush1.bf16.msra.mxu0 0
  %715 = vmatprep.subr.bf16.mxu0 0
  %716 = vmatpush1.bf16.msra.mxu0 0
  %717 = vmatprep.subr.bf16.mxu0 0
  %718 = vmatpush1.bf16.msra.mxu0 0
  %719 = vmatprep.subr.bf16.mxu0 0
  %720 = vmatpush1.bf16.msra.mxu0 0
  %721 = vmatprep.subr.bf16.mxu0 0
  %722 = vmatpush1.bf16.msra.mxu0 0
  %723 = vmatprep.subr.bf16.mxu0 0
  %724 = vmatpush1.bf16.msra.mxu0 0
  %725 = vmatprep.subr.bf16.mxu0 0
  %726 = vmatpush1.bf16.msra.mxu0 0
  %727 = vmatprep.subr.bf16.mxu0 0
  %728 = vmatpush1.bf16.msra.mxu0 0
  %729 = vmatprep.subr.bf16.mxu0 0
  %730 = vmatpush1.bf16.msra.mxu0 0
  %731 = vmatprep.mubr.bf16.mxu0 0
  %732 = vmatmul.mubr.bf16.gmra.mrb[0].mxu0 %v697
  %v733 = vpop.f32.mrb[0].mxu0
  %v734 = vadd.f32 0.0, %v733
  %v735 = vpop.f32.mrb[0].mxu0
  %v736 = vpop.f32.mrb[0].mxu0
  %v737 = vadd.f32 0.0, %v736
  %v738 = vpop.f32.mrb[0].mxu0
  %739 = vdwg.mxu0
  %v741 = vsel %vm248, %v692, 0
  %743 = vmatprep.subr.bf16.mxu0 0
  %744 = vmatpush1.bf16.msra.mxu0 %v360
  %745 = vmatprep.subr.bf16.mxu0 0
  %746 = vmatpush1.bf16.msra.mxu0 %v361
  %747 = vmatprep.subr.bf16.mxu0 0
  %748 = vmatpush1.bf16.msra.mxu0 %v362
  %749 = vmatprep.subr.bf16.mxu0 0
  %750 = vmatpush1.bf16.msra.mxu0 %v363
  %751 = vmatprep.subr.bf16.mxu0 0
  %752 = vmatpush1.bf16.msra.mxu0 0
  %753 = vmatprep.subr.bf16.mxu0 0
  %754 = vmatpush1.bf16.msra.mxu0 0
  %755 = vmatprep.subr.bf16.mxu0 0
  %756 = vmatpush1.bf16.msra.mxu0 0
  %757 = vmatprep.subr.bf16.mxu0 0
  %758 = vmatpush1.bf16.msra.mxu0 0
  %759 = vmatprep.subr.bf16.mxu0 0
  %760 = vmatpush1.bf16.msra.mxu0 0
  %761 = vmatprep.subr.bf16.mxu0 0
  %762 = vmatpush1.bf16.msra.mxu0 0
  %763 = vmatprep.subr.bf16.mxu0 0
  %764 = vmatpush1.bf16.msra.mxu0 0
  %765 = vmatprep.subr.bf16.mxu0 0
  %766 = vmatpush1.bf16.msra.mxu0 0
  %767 = vmatprep.subr.bf16.mxu0 0
  %768 = vmatpush1.bf16.msra.mxu0 0
  %769 = vmatprep.subr.bf16.mxu0 0
  %770 = vmatpush1.bf16.msra.mxu0 0
  %771 = vmatprep.subr.bf16.mxu0 0
  %772 = vmatpush1.bf16.msra.mxu0 0
  %773 = vmatprep.subr.bf16.mxu0 0
  %774 = vmatpush1.bf16.msra.mxu0 0
  %775 = vmatprep.mubr.bf16.mxu0 0
  %776 = vmatmul.mubr.bf16.gmra.mrb[0].mxu0 %v741
  %v777 = vpop.f32.mrb[0].mxu0
  %v778 = vadd.f32 %v734, %v777
  %v779 = vpop.f32.mrb[0].mxu0
  %v780 = vpop.f32.mrb[0].mxu0
  %v781 = vadd.f32 %v737, %v780
  %v782 = vpop.f32.mrb[0].mxu0
  %783 = vdwg.mxu0
  %v784 = vld [vmem:[%s689 + $0x2] sm:$0xff]
  %v785 = vld [vmem:[%s689 + $0xa] sm:$0xff]
  %v786 = vpack.c.bf16 %v785, %v784
  %v788 = vsel %vm248, %v786, 0
  %790 = vmatprep.subr.bf16.mxu0 0
  %791 = vmatpush1.bf16.msra.mxu0 %v440
  %792 = vmatprep.subr.bf16.mxu0 0
  %793 = vmatpush1.bf16.msra.mxu0 %v441
  %794 = vmatprep.subr.bf16.mxu0 0
  %795 = vmatpush1.bf16.msra.mxu0 %v442
  %796 = vmatprep.subr.bf16.mxu0 0
  %797 = vmatpush1.bf16.msra.mxu0 %v443
  %798 = vmatprep.subr.bf16.mxu0 0
  %799 = vmatpush1.bf16.msra.mxu0 0
  %800 = vmatprep.subr.bf16.mxu0 0
  %801 = vmatpush1.bf16.msra.mxu0 0
  %802 = vmatprep.subr.bf16.mxu0 0
  %803 = vmatpush1.bf16.msra.mxu0 0
  %804 = vmatprep.subr.bf16.mxu0 0
  %805 = vmatpush1.bf16.msra.mxu0 0
  %806 = vmatprep.subr.bf16.mxu0 0
  %807 = vmatpush1.bf16.msra.mxu0 0
  %808 = vmatprep.subr.bf16.mxu0 0
  %809 = vmatpush1.bf16.msra.mxu0 0
  %810 = vmatprep.subr.bf16.mxu0 0
  %811 = vmatpush1.bf16.msra.mxu0 0
  %812 = vmatprep.subr.bf16.mxu0 0
  %813 = vmatpush1.bf16.msra.mxu0 0
  %814 = vmatprep.subr.bf16.mxu0 0
  %815 = vmatpush1.bf16.msra.mxu0 0
  %816 = vmatprep.subr.bf16.mxu0 0
  %817 = vmatpush1.bf16.msra.mxu0 0
  %818 = vmatprep.subr.bf16.mxu0 0
  %819 = vmatpush1.bf16.msra.mxu0 0
  %820 = vmatprep.subr.bf16.mxu0 0
  %821 = vmatpush1.bf16.msra.mxu0 0
  %822 = vmatprep.mubr.bf16.mxu0 0
  %823 = vmatmul.mubr.bf16.gmra.mrb[0].mxu0 %v788
  %v824 = vpop.f32.mrb[0].mxu0
  %v825 = vadd.f32 0.0, %v824
  %v826 = vpop.f32.mrb[0].mxu0
  %v827 = vpop.f32.mrb[0].mxu0
  %v828 = vadd.f32 0.0, %v827
  %v829 = vpop.f32.mrb[0].mxu0
  %830 = vdwg.mxu0
  %v831 = vadd.f32 %v778, %v825
  %v832 = vadd.f32 %v781, %v828
  %v833 = vld [vmem:[%s235] sm:$0xff]
  %v834 = vld [vmem:[%s235 + $0x8] sm:$0xff]
  %v835 = vpack.c.bf16 %v834, %v833
  %v836 = vld [vmem:[%s235 + $0x1] sm:$0xff]
  %v837 = vld [vmem:[%s235 + $0x9] sm:$0xff]
  %v838 = vpack.c.bf16 %v837, %v836
  %v840 = vsel %vm136, %v838, 0
  %842 = vmatprep.subr.bf16.mxu0 0
  %843 = vmatpush1.bf16.msra.mxu0 %v517
  %844 = vmatprep.subr.bf16.mxu0 0
  %845 = vmatpush1.bf16.msra.mxu0 %v518
  %846 = vmatprep.subr.bf16.mxu0 0
  %847 = vmatpush1.bf16.msra.mxu0 0
  %848 = vmatprep.subr.bf16.mxu0 0
  %849 = vmatpush1.bf16.msra.mxu0 0
  %850 = vmatprep.subr.bf16.mxu0 0
  %851 = vmatpush1.bf16.msra.mxu0 0
  %852 = vmatprep.subr.bf16.mxu0 0
  %853 = vmatpush1.bf16.msra.mxu0 0
  %854 = vmatprep.subr.bf16.mxu0 0
  %855 = vmatpush1.bf16.msra.mxu0 0
  %856 = vmatprep.subr.bf16.mxu0 0
  %857 = vmatpush1.bf16.msra.mxu0 0
  %858 = vmatprep.subr.bf16.mxu0 0
  %859 = vmatpush1.bf16.msra.mxu0 0
  %860 = vmatprep.subr.bf16.mxu0 0
  %861 = vmatpush1.bf16.msra.mxu0 0
  %862 = vmatprep.subr.bf16.mxu0 0
  %863 = vmatpush1.bf16.msra.mxu0 0
  %864 = vmatprep.subr.bf16.mxu0 0
  %865 = vmatpush1.bf16.msra.mxu0 0
  %866 = vmatprep.subr.bf16.mxu0 0
  %867 = vmatpush1.bf16.msra.mxu0 0
  %868 = vmatprep.subr.bf16.mxu0 0
  %869 = vmatpush1.bf16.msra.mxu0 0
  %870 = vmatprep.subr.bf16.mxu0 0
  %871 = vmatpush1.bf16.msra.mxu0 0
  %872 = vmatprep.subr.bf16.mxu0 0
  %873 = vmatpush1.bf16.msra.mxu0 0
  %874 = vmatprep.mubr.bf16.mxu0 0
  %875 = vmatmul.mubr.bf16.gmra.mrb[0].mxu0 %v840
  %v876 = vpop.f32.mrb[0].mxu0
  %v877 = vadd.f32 0.0, %v876
  %v878 = vpop.f32.mrb[0].mxu0
  %v879 = vpop.f32.mrb[0].mxu0
  %v880 = vadd.f32 0.0, %v879
  %v881 = vpop.f32.mrb[0].mxu0
  %882 = vdwg.mxu0
  %v884 = vsel %vm136, %v835, 0
  %886 = vmatprep.subr.bf16.mxu0 0
  %887 = vmatpush1.bf16.msra.mxu0 %v573
  %888 = vmatprep.subr.bf16.mxu0 0
  %889 = vmatpush1.bf16.msra.mxu0 %v574
  %890 = vmatprep.subr.bf16.mxu0 0
  %891 = vmatpush1.bf16.msra.mxu0 0
  %892 = vmatprep.subr.bf16.mxu0 0
  %893 = vmatpush1.bf16.msra.mxu0 0
  %894 = vmatprep.subr.bf16.mxu0 0
  %895 = vmatpush1.bf16.msra.mxu0 0
  %896 = vmatprep.subr.bf16.mxu0 0
  %897 = vmatpush1.bf16.msra.mxu0 0
  %898 = vmatprep.subr.bf16.mxu0 0
  %899 = vmatpush1.bf16.msra.mxu0 0
  %900 = vmatprep.subr.bf16.mxu0 0
  %901 = vmatpush1.bf16.msra.mxu0 0
  %902 = vmatprep.subr.bf16.mxu0 0
  %903 = vmatpush1.bf16.msra.mxu0 0
  %904 = vmatprep.subr.bf16.mxu0 0
  %905 = vmatpush1.bf16.msra.mxu0 0
  %906 = vmatprep.subr.bf16.mxu0 0
  %907 = vmatpush1.bf16.msra.mxu0 0
  %908 = vmatprep.subr.bf16.mxu0 0
  %909 = vmatpush1.bf16.msra.mxu0 0
  %910 = vmatprep.subr.bf16.mxu0 0
  %911 = vmatpush1.bf16.msra.mxu0 0
  %912 = vmatprep.subr.bf16.mxu0 0
  %913 = vmatpush1.bf16.msra.mxu0 0
  %914 = vmatprep.subr.bf16.mxu0 0
  %915 = vmatpush1.bf16.msra.mxu0 0
  %916 = vmatprep.subr.bf16.mxu0 0
  %917 = vmatpush1.bf16.msra.mxu0 0
  %918 = vmatprep.mubr.bf16.mxu0 0
  %919 = vmatmul.mubr.bf16.gmra.mrb[0].mxu0 %v884
  %v920 = vpop.f32.mrb[0].mxu0
  %v921 = vadd.f32 %v877, %v920
  %v922 = vpop.f32.mrb[0].mxu0
  %v923 = vpop.f32.mrb[0].mxu0
  %v924 = vadd.f32 %v880, %v923
  %v925 = vpop.f32.mrb[0].mxu0
  %926 = vdwg.mxu0
  %v927 = vld [vmem:[%s235 + $0x2] sm:$0xff]
  %v928 = vld [vmem:[%s235 + $0xa] sm:$0xff]
  %v929 = vpack.c.bf16 %v928, %v927
  %v931 = vsel %vm136, %v929, 0
  %933 = vmatprep.subr.bf16.mxu0 0
  %934 = vmatpush1.bf16.msra.mxu0 %v637
  %935 = vmatprep.subr.bf16.mxu0 0
  %936 = vmatpush1.bf16.msra.mxu0 %v638
  %937 = vmatprep.subr.bf16.mxu0 0
  %938 = vmatpush1.bf16.msra.mxu0 0
  %939 = vmatprep.subr.bf16.mxu0 0
  %940 = vmatpush1.bf16.msra.mxu0 0
  %941 = vmatprep.subr.bf16.mxu0 0
  %942 = vmatpush1.bf16.msra.mxu0 0
  %943 = vmatprep.subr.bf16.mxu0 0
  %944 = vmatpush1.bf16.msra.mxu0 0
  %945 = vmatprep.subr.bf16.mxu0 0
  %946 = vmatpush1.bf16.msra.mxu0 0
  %947 = vmatprep.subr.bf16.mxu0 0
  %948 = vmatpush1.bf16.msra.mxu0 0
  %949 = vmatprep.subr.bf16.mxu0 0
  %950 = vmatpush1.bf16.msra.mxu0 0
  %951 = vmatprep.subr.bf16.mxu0 0
  %952 = vmatpush1.bf16.msra.mxu0 0
  %953 = vmatprep.subr.bf16.mxu0 0
  %954 = vmatpush1.bf16.msra.mxu0 0
  %955 = vmatprep.subr.bf16.mxu0 0
  %956 = vmatpush1.bf16.msra.mxu0 0
  %957 = vmatprep.subr.bf16.mxu0 0
  %958 = vmatpush1.bf16.msra.mxu0 0
  %959 = vmatprep.subr.bf16.mxu0 0
  %960 = vmatpush1.bf16.msra.mxu0 0
  %961 = vmatprep.subr.bf16.mxu0 0
  %962 = vmatpush1.bf16.msra.mxu0 0
  %963 = vmatprep.subr.bf16.mxu0 0
  %964 = vmatpush1.bf16.msra.mxu0 0
  %965 = vmatprep.mubr.bf16.mxu0 0
  %966 = vmatmul.mubr.bf16.gmra.mrb[0].mxu0 %v931
  %v967 = vpop.f32.mrb[0].mxu0
  %v968 = vadd.f32 0.0, %v967
  %v969 = vpop.f32.mrb[0].mxu0
  %v970 = vpop.f32.mrb[0].mxu0
  %v971 = vadd.f32 0.0, %v970
  %v972 = vpop.f32.mrb[0].mxu0
  %973 = vdwg.mxu0
  %v974 = vadd.f32 %v921, %v968
  %v975 = vadd.f32 %v924, %v971
  %v976 = vadd.f32 %v831, %v974
  %v977 = vadd.f32 %v832, %v975
  %v978 = vsel %vm248, %v687, 0.0
  %v979 = vsel %vm248, %v688, 0.0
  %v980 = vadd.f32 %v978, %v979
  %v981 = vrot.slane %v980, 4
  %v982 = vadd.f32 %v980, %v981
  %v983 = vrot.slane %v982, 2
  %v984 = vadd.f32 %v982, %v983
  %v985 = vrot.slane %v984, 1
  %v986 = vadd.f32 %v984, %v985
  %v987 = vadd.f32 %v986, 0.0
  %v988 = vsel %vm248, %v976, 0.0
  %v989 = vsel %vm248, %v977, 0.0
  %v990 = vadd.f32 %v988, %v989
  %v991 = vrot.slane %v990, 4
  %v992 = vadd.f32 %v990, %v991
  %v993 = vrot.slane %v992, 2
  %v994 = vadd.f32 %v992, %v993
  %v995 = vrot.slane %v994, 1
  %v996 = vadd.f32 %v994, %v995
  %v997 = vadd.f32 %v987, %v996
  %v998 = vld [vmem:[%s6] sm:$0xff]
  %v999 = vld [vmem:[%s6 + $0x8] sm:$0xff]
  %v1000 = vld [vmem:[%s6 + $0x10] sm:$0xff]
  %v1001 = vld [vmem:[%s6 + $0x18] sm:$0xff]
  %v1002 = vld [vmem:[%s6 + $0x20] sm:$0xff]
  %v1003 = vld [vmem:[%s6 + $0x28] sm:$0xff]
  %v1004 = vld [vmem:[%s6 + $0x30] sm:$0xff]
  %v1005 = vld [vmem:[%s6 + $0x38] sm:$0xff]
  %v1007 = vsel %vm248, %v997, 0
  %1009 = vmatprep.subr.mxu0 0.0
  %1010 = vmatpush1.msra.mxu0 %v998
  %1011 = vmatprep.subr.mxu0 0.0
  %1012 = vmatpush1.msra.mxu0 %v999
  %1013 = vmatprep.subr.mxu0 0.0
  %1014 = vmatpush1.msra.mxu0 %v1000
  %1015 = vmatprep.subr.mxu0 0.0
  %1016 = vmatpush1.msra.mxu0 %v1001
  %1017 = vmatprep.subr.mxu0 0.0
  %1018 = vmatpush1.msra.mxu0 %v1002
  %1019 = vmatprep.subr.mxu0 0.0
  %1020 = vmatpush1.msra.mxu0 %v1003
  %1021 = vmatprep.subr.mxu0 0.0
  %1022 = vmatpush1.msra.mxu0 %v1004
  %1023 = vmatprep.subr.mxu0 0.0
  %1024 = vmatpush1.msra.mxu0 %v1005
  %1025 = vmatprep.subr.mxu0 0.0
  %1026 = vmatpush1.msra.mxu0 0.0
  %1027 = vmatprep.subr.mxu0 0.0
  %1028 = vmatpush1.msra.mxu0 0.0
  %1029 = vmatprep.subr.mxu0 0.0
  %1030 = vmatpush1.msra.mxu0 0.0
  %1031 = vmatprep.subr.mxu0 0.0
  %1032 = vmatpush1.msra.mxu0 0.0
  %1033 = vmatprep.subr.mxu0 0.0
  %1034 = vmatpush1.msra.mxu0 0.0
  %1035 = vmatprep.subr.mxu0 0.0
  %1036 = vmatpush1.msra.mxu0 0.0
  %1037 = vmatprep.subr.mxu0 0.0
  %1038 = vmatpush1.msra.mxu0 0.0
  %1039 = vmatprep.subr.mxu0 0.0
  %1040 = vmatpush1.msra.mxu0 0.0
  %1041 = vmatprep.subr.mxu0 0.0
  %1042 = vmatpush1.msra.mxu0 0.0
  %1043 = vmatprep.subr.mxu0 0.0
  %1044 = vmatpush1.msra.mxu0 0.0
  %1045 = vmatprep.subr.mxu0 0.0
  %1046 = vmatpush1.msra.mxu0 0.0
  %1047 = vmatprep.subr.mxu0 0.0
  %1048 = vmatpush1.msra.mxu0 0.0
  %1049 = vmatprep.subr.mxu0 0.0
  %1050 = vmatpush1.msra.mxu0 0.0
  %1051 = vmatprep.subr.mxu0 0.0
  %1052 = vmatpush1.msra.mxu0 0.0
  %1053 = vmatprep.subr.mxu0 0.0
  %1054 = vmatpush1.msra.mxu0 0.0
  %1055 = vmatprep.subr.mxu0 0.0
  %1056 = vmatpush1.msra.mxu0 0.0
  %1057 = vmatprep.subr.mxu0 0.0
  %1058 = vmatpush1.msra.mxu0 0.0
  %1059 = vmatprep.subr.mxu0 0.0
  %1060 = vmatpush1.msra.mxu0 0.0
  %1061 = vmatprep.subr.mxu0 0.0
  %1062 = vmatpush1.msra.mxu0 0.0
  %1063 = vmatprep.subr.mxu0 0.0
  %1064 = vmatpush1.msra.mxu0 0.0
  %1065 = vmatprep.subr.mxu0 0.0
  %1066 = vmatpush1.msra.mxu0 0.0
  %1067 = vmatprep.subr.mxu0 0.0
  %1068 = vmatpush1.msra.mxu0 0.0
  %1069 = vmatprep.subr.mxu0 0.0
  %1070 = vmatpush1.msra.mxu0 0.0
  %1071 = vmatprep.subr.mxu0 0.0
  %1072 = vmatpush1.msra.mxu0 0.0
  %1073 = vmatprep.mubr.f32.mxu0 0.0
  %1074 = vmatmul.mubr.f32.gmra.mrb[0].mxu0 %v1007
  %v1075 = vpop.f32.mrb[0].mxu0
  %v1076 = vadd.f32 0.0, %v1075
  %v1077 = vpop.f32.mrb[0].mxu0
  %1078 = vdwg.mxu0
  %v1079 = vmul.f32 %v1076, 0.001953125
  %v1080 = vlaneseq
  %v1081 = vshrl.u32 %v1080, 7
  %v1082 = vsub.s32 0, %v1081
  %v1083 = vrot.slane %v1079, %v1082
  %v1084 = vsub.f32 %v687, %v1083
  %v1085 = vsub.f32 %v688, %v1083
  %v1086 = vmul.f32 %v1084, %v1084
  %v1087 = vmul.f32 %v1085, %v1085
  %v1088 = vsel %vm248, %v1086, 0.0
  %v1089 = vsel %vm248, %v1087, 0.0
  %v1090 = vadd.f32 %v1088, %v1089
  %v1091 = vrot.slane %v1090, 4
  %v1092 = vadd.f32 %v1090, %v1091
  %v1093 = vrot.slane %v1092, 2
  %v1094 = vadd.f32 %v1092, %v1093
  %v1095 = vrot.slane %v1094, 1
  %v1096 = vadd.f32 %v1094, %v1095
  %v1097 = vadd.f32 %v1096, 0.0
  %v1098 = vsub.f32 %v976, %v1083
  %v1099 = vsub.f32 %v977, %v1083
  %v1100 = vmul.f32 %v1098, %v1098
  %v1101 = vmul.f32 %v1099, %v1099
  %v1102 = vsel %vm248, %v1100, 0.0
  %v1103 = vsel %vm248, %v1101, 0.0
  %v1104 = vadd.f32 %v1102, %v1103
  %v1105 = vrot.slane %v1104, 4
  %v1106 = vadd.f32 %v1104, %v1105
  %v1107 = vrot.slane %v1106, 2
  %v1108 = vadd.f32 %v1106, %v1107
  %v1109 = vrot.slane %v1108, 1
  %v1110 = vadd.f32 %v1108, %v1109
  %v1111 = vadd.f32 %v1097, %v1110
  %v1113 = vsel %vm248, %v1111, 0
  %1115 = vmatprep.subr.mxu0 0.0
  %1116 = vmatpush1.msra.mxu0 %v998
  %1117 = vmatprep.subr.mxu0 0.0
  %1118 = vmatpush1.msra.mxu0 %v999
  %1119 = vmatprep.subr.mxu0 0.0
  %1120 = vmatpush1.msra.mxu0 %v1000
  %1121 = vmatprep.subr.mxu0 0.0
  %1122 = vmatpush1.msra.mxu0 %v1001
  %1123 = vmatprep.subr.mxu0 0.0
  %1124 = vmatpush1.msra.mxu0 %v1002
  %1125 = vmatprep.subr.mxu0 0.0
  %1126 = vmatpush1.msra.mxu0 %v1003
  %1127 = vmatprep.subr.mxu0 0.0
  %1128 = vmatpush1.msra.mxu0 %v1004
  %1129 = vmatprep.subr.mxu0 0.0
  %1130 = vmatpush1.msra.mxu0 %v1005
  %1131 = vmatprep.subr.mxu0 0.0
  %1132 = vmatpush1.msra.mxu0 0.0
  %1133 = vmatprep.subr.mxu0 0.0
  %1134 = vmatpush1.msra.mxu0 0.0
  %1135 = vmatprep.subr.mxu0 0.0
  %1136 = vmatpush1.msra.mxu0 0.0
  %1137 = vmatprep.subr.mxu0 0.0
  %1138 = vmatpush1.msra.mxu0 0.0
  %1139 = vmatprep.subr.mxu0 0.0
  %1140 = vmatpush1.msra.mxu0 0.0
  %1141 = vmatprep.subr.mxu0 0.0
  %1142 = vmatpush1.msra.mxu0 0.0
  %1143 = vmatprep.subr.mxu0 0.0
  %1144 = vmatpush1.msra.mxu0 0.0
  %1145 = vmatprep.subr.mxu0 0.0
  %1146 = vmatpush1.msra.mxu0 0.0
  %1147 = vmatprep.subr.mxu0 0.0
  %1148 = vmatpush1.msra.mxu0 0.0
  %1149 = vmatprep.subr.mxu0 0.0
  %1150 = vmatpush1.msra.mxu0 0.0
  %1151 = vmatprep.subr.mxu0 0.0
  %1152 = vmatpush1.msra.mxu0 0.0
  %1153 = vmatprep.subr.mxu0 0.0
  %1154 = vmatpush1.msra.mxu0 0.0
  %1155 = vmatprep.subr.mxu0 0.0
  %1156 = vmatpush1.msra.mxu0 0.0
  %1157 = vmatprep.subr.mxu0 0.0
  %1158 = vmatpush1.msra.mxu0 0.0
  %1159 = vmatprep.subr.mxu0 0.0
  %1160 = vmatpush1.msra.mxu0 0.0
  %1161 = vmatprep.subr.mxu0 0.0
  %1162 = vmatpush1.msra.mxu0 0.0
  %1163 = vmatprep.subr.mxu0 0.0
  %1164 = vmatpush1.msra.mxu0 0.0
  %1165 = vmatprep.subr.mxu0 0.0
  %1166 = vmatpush1.msra.mxu0 0.0
  %1167 = vmatprep.subr.mxu0 0.0
  %1168 = vmatpush1.msra.mxu0 0.0
  %1169 = vmatprep.subr.mxu0 0.0
  %1170 = vmatpush1.msra.mxu0 0.0
  %1171 = vmatprep.subr.mxu0 0.0
  %1172 = vmatpush1.msra.mxu0 0.0
  %1173 = vmatprep.subr.mxu0 0.0
  %1174 = vmatpush1.msra.mxu0 0.0
  %1175 = vmatprep.subr.mxu0 0.0
  %1176 = vmatpush1.msra.mxu0 0.0
  %1177 = vmatprep.subr.mxu0 0.0
  %1178 = vmatpush1.msra.mxu0 0.0
  %1179 = vmatprep.mubr.f32.mxu0 0.0
  %1180 = vmatmul.mubr.f32.gmra.mrb[0].mxu0 %v1113
  %v1181 = vpop.f32.mrb[0].mxu0
  %v1182 = vadd.f32 0.0, %v1181
  %v1183 = vpop.f32.mrb[0].mxu0
  %1184 = vdwg.mxu0
  %v1185 = vmul.f32 %v1182, 0.001953125
  %v1186 = vadd.f32 %v1185, 1e-05
  %v1187 = vrsqrt.pop %v1186
  %v1188 = vld [vmem:[%s7] sm:$0x1]
  %v1189 = vmul.f32 %v1187, %v1188
  %v1190 = vlaneseq
  %v1191 = vshrl.u32 %v1190, 7
  %v1192 = vsub.s32 0, %v1191
  %v1193 = vrot.slane %v1189, %v1192
  %v1194 = vmul.f32 %v1084, %v1193
  %v1195 = vmul.f32 %v1085, %v1193
  %v1196 = vld [vmem:[%s8] sm:$0x1]
  %v1198 = vlaneseq
  %v1199 = vshrl.u32 %v1198, 7
  %v1200 = vsub.s32 0, %v1199
  %v1201 = vrot.slane %v1196, %v1200
  %v1203 = vadd.f32 %v1194, %v1201
  %v1204 = vadd.f32 %v1195, %v1201
  %v1205 = vmax.f32 %v1203, 0.0
  %v1206 = vmax.f32 %v1204, 0.0
  %v1207 = vmul.f32 %v1098, %v1193
  %v1208 = vmul.f32 %v1099, %v1193
  %v1209 = vadd.f32 %v1207, %v1201
  %v1210 = vadd.f32 %v1208, %v1201
  %v1211 = vmax.f32 %v1209, 0.0
  %v1212 = vmax.f32 %v1210, 0.0
  %1213 = vst.msk [vmem:[#allocation4] sm:$0x1] %vm239, 0.0
  %1214 = vst.msk [vmem:[#allocation4 + $0x18] sm:$0x1] %vm239, 0.0
  %1215 = vst.msk [vmem:[#allocation4 + $0x11] sm:$0x1] %vm239, 0.0
  %1216 = vst.msk [vmem:[#allocation4 + $0x29] sm:$0x1] %vm239, 0.0
  %1217 = vst.msk [vmem:[#allocation4 + $0x1] sm:$0xff] %vm248, %v1205
  %1218 = vst.msk [vmem:[#allocation4 + $0x9] sm:$0xff] %vm248, %v1206
  %s1219 = scalar_lea.vmem [#allocation4], 24
  %1220 = vst.msk [vmem:[%s1219 + $0x1] sm:$0xff] %vm248, %v1211
  %1221 = vst.msk [vmem:[%s1219 + $0x9] sm:$0xff] %vm248, %v1212
  %v1222 = vld [vmem:[#allocation4] sm:$0xff]
  %v1223 = vld [vmem:[#allocation4 + $0x8] sm:$0xff]
  %v1224 = vpack.c.bf16 %v1223, %v1222
  %v1225 = vld [vmem:[%s5] sm:$0xf]
  %v1226 = vld [vmem:[%s5 + $0x4] sm:$0xf]
  %v1227 = vld [vmem:[%s5 + $0x8] sm:$0xf]
  %v1228 = vld [vmem:[%s5 + $0xc] sm:$0xf]
  %v1229 = vld [vmem:[%s5 + $0x10] sm:$0xf]
  %v1230 = vld [vmem:[%s5 + $0x14] sm:$0xf]
  %v1231 = vld [vmem:[%s5 + $0x18] sm:$0xf]
  %v1232 = vld [vmem:[%s5 + $0x1c] sm:$0xf]
  %v1233 = vld [vmem:[#allocation4 + $0x1] sm:$0xff]
  %v1234 = vld [vmem:[#allocation4 + $0x9] sm:$0xff]
  %v1235 = vpack.c.bf16 %v1234, %v1233
  %s1236 = scalar_lea.vmem %s5, 32
  %v1237 = vld [vmem:[%s1236] sm:$0xf]
  %v1238 = vld [vmem:[%s1236 + $0x4] sm:$0xf]
  %v1239 = vld [vmem:[%s1236 + $0x8] sm:$0xf]
  %v1240 = vld [vmem:[%s1236 + $0xc] sm:$0xf]
  %v1241 = vld [vmem:[%s1236 + $0x10] sm:$0xf]
  %v1242 = vld [vmem:[%s1236 + $0x14] sm:$0xf]
  %v1243 = vld [vmem:[%s1236 + $0x18] sm:$0xf]
  %v1244 = vld [vmem:[%s1236 + $0x1c] sm:$0xf]
  %v1253 = vunpack.c.l.b16 %v1237
  %v1254 = vunpack.c.l.b16 %v1238
  %v1255 = vunpack.c.l.b16 %v1239
  %v1256 = vunpack.c.l.b16 %v1240
  %v1257 = vunpack.c.l.b16 %v1241
  %v1258 = vunpack.c.l.b16 %v1242
  %v1259 = vunpack.c.l.b16 %v1243
  %v1260 = vunpack.c.l.b16 %v1244
  %v1261 = vpack.c.b16 %v1254, %v1253
  %v1262 = vpack.c.b16 %v1256, %v1255
  %v1263 = vpack.c.b16 %v1258, %v1257
  %v1264 = vpack.c.b16 %v1260, %v1259
  %v1270 = vsel %vm248, %v1235, 0
  %1272 = vmatprep.subr.bf16.mxu0 0
  %1273 = vmatpush1.bf16.msra.mxu0 %v1261
  %1274 = vmatprep.subr.bf16.mxu0 0
  %1275 = vmatpush1.bf16.msra.mxu0 %v1262
  %1276 = vmatprep.subr.bf16.mxu0 0
  %1277 = vmatpush1.bf16.msra.mxu0 %v1263
  %1278 = vmatprep.subr.bf16.mxu0 0
  %1279 = vmatpush1.bf16.msra.mxu0 %v1264
  %1280 = vmatprep.subr.bf16.mxu0 0
  %1281 = vmatpush1.bf16.msra.mxu0 0
  %1282 = vmatprep.subr.bf16.mxu0 0
  %1283 = vmatpush1.bf16.msra.mxu0 0
  %1284 = vmatprep.subr.bf16.mxu0 0
  %1285 = vmatpush1.bf16.msra.mxu0 0
  %1286 = vmatprep.subr.bf16.mxu0 0
  %1287 = vmatpush1.bf16.msra.mxu0 0
  %1288 = vmatprep.subr.bf16.mxu0 0
  %1289 = vmatpush1.bf16.msra.mxu0 0
  %1290 = vmatprep.subr.bf16.mxu0 0
  %1291 = vmatpush1.bf16.msra.mxu0 0
  %1292 = vmatprep.subr.bf16.mxu0 0
  %1293 = vmatpush1.bf16.msra.mxu0 0
  %1294 = vmatprep.subr.bf16.mxu0 0
  %1295 = vmatpush1.bf16.msra.mxu0 0
  %1296 = vmatprep.subr.bf16.mxu0 0
  %1297 = vmatpush1.bf16.msra.mxu0 0
  %1298 = vmatprep.subr.bf16.mxu0 0
  %1299 = vmatpush1.bf16.msra.mxu0 0
  %1300 = vmatprep.subr.bf16.mxu0 0
  %1301 = vmatpush1.bf16.msra.mxu0 0
  %1302 = vmatprep.subr.bf16.mxu0 0
  %1303 = vmatpush1.bf16.msra.mxu0 0
  %1304 = vmatprep.mubr.bf16.mxu0 0
  %1305 = vmatmul.mubr.bf16.gmra.mrb[0].mxu0 %v1270
  %v1306 = vpop.f32.mrb[0].mxu0
  %v1307 = vadd.f32 0.0, %v1306
  %v1308 = vpop.f32.mrb[0].mxu0
  %v1309 = vpop.f32.mrb[0].mxu0
  %v1310 = vadd.f32 0.0, %v1309
  %v1311 = vpop.f32.mrb[0].mxu0
  %1312 = vdwg.mxu0
  %v1321 = vunpack.c.l.b16 %v1225
  %v1322 = vunpack.c.l.b16 %v1226
  %v1323 = vunpack.c.l.b16 %v1227
  %v1324 = vunpack.c.l.b16 %v1228
  %v1325 = vunpack.c.l.b16 %v1229
  %v1326 = vunpack.c.l.b16 %v1230
  %v1327 = vunpack.c.l.b16 %v1231
  %v1328 = vunpack.c.l.b16 %v1232
  %v1329 = vpack.c.b16 %v1322, %v1321
  %v1330 = vpack.c.b16 %v1324, %v1323
  %v1331 = vpack.c.b16 %v1326, %v1325
  %v1332 = vpack.c.b16 %v1328, %v1327
  %v1338 = vsel %vm248, %v1224, 0
  %1340 = vmatprep.subr.bf16.mxu0 0
  %1341 = vmatpush1.bf16.msra.mxu0 %v1329
  %1342 = vmatprep.subr.bf16.mxu0 0
  %1343 = vmatpush1.bf16.msra.mxu0 %v1330
  %1344 = vmatprep.subr.bf16.mxu0 0
  %1345 = vmatpush1.bf16.msra.mxu0 %v1331
  %1346 = vmatprep.subr.bf16.mxu0 0
  %1347 = vmatpush1.bf16.msra.mxu0 %v1332
  %1348 = vmatprep.subr.bf16.mxu0 0
  %1349 = vmatpush1.bf16.msra.mxu0 0
  %1350 = vmatprep.subr.bf16.mxu0 0
  %1351 = vmatpush1.bf16.msra.mxu0 0
  %1352 = vmatprep.subr.bf16.mxu0 0
  %1353 = vmatpush1.bf16.msra.mxu0 0
  %1354 = vmatprep.subr.bf16.mxu0 0
  %1355 = vmatpush1.bf16.msra.mxu0 0
  %1356 = vmatprep.subr.bf16.mxu0 0
  %1357 = vmatpush1.bf16.msra.mxu0 0
  %1358 = vmatprep.subr.bf16.mxu0 0
  %1359 = vmatpush1.bf16.msra.mxu0 0
  %1360 = vmatprep.subr.bf16.mxu0 0
  %1361 = vmatpush1.bf16.msra.mxu0 0
  %1362 = vmatprep.subr.bf16.mxu0 0
  %1363 = vmatpush1.bf16.msra.mxu0 0
  %1364 = vmatprep.subr.bf16.mxu0 0
  %1365 = vmatpush1.bf16.msra.mxu0 0
  %1366 = vmatprep.subr.bf16.mxu0 0
  %1367 = vmatpush1.bf16.msra.mxu0 0
  %1368 = vmatprep.subr.bf16.mxu0 0
  %1369 = vmatpush1.bf16.msra.mxu0 0
  %1370 = vmatprep.subr.bf16.mxu0 0
  %1371 = vmatpush1.bf16.msra.mxu0 0
  %1372 = vmatprep.mubr.bf16.mxu0 0
  %1373 = vmatmul.mubr.bf16.gmra.mrb[0].mxu0 %v1338
  %v1374 = vpop.f32.mrb[0].mxu0
  %v1375 = vadd.f32 %v1307, %v1374
  %v1376 = vpop.f32.mrb[0].mxu0
  %v1377 = vpop.f32.mrb[0].mxu0
  %v1378 = vadd.f32 %v1310, %v1377
  %v1379 = vpop.f32.mrb[0].mxu0
  %1380 = vdwg.mxu0
  %v1381 = vld [vmem:[#allocation4 + $0x2] sm:$0xff]
  %v1382 = vld [vmem:[#allocation4 + $0xa] sm:$0xff]
  %v1383 = vpack.c.bf16 %v1382, %v1381
  %s1384 = scalar_lea.vmem %s5, 64
  %v1385 = vld [vmem:[%s1384] sm:$0xf]
  %v1386 = vld [vmem:[%s1384 + $0x4] sm:$0xf]
  %v1387 = vld [vmem:[%s1384 + $0x8] sm:$0xf]
  %v1388 = vld [vmem:[%s1384 + $0xc] sm:$0xf]
  %v1389 = vld [vmem:[%s1384 + $0x10] sm:$0xf]
  %v1390 = vld [vmem:[%s1384 + $0x14] sm:$0xf]
  %v1391 = vld [vmem:[%s1384 + $0x18] sm:$0xf]
  %v1392 = vld [vmem:[%s1384 + $0x1c] sm:$0xf]
  %v1401 = vunpack.c.l.b16 %v1385
  %v1402 = vunpack.c.l.b16 %v1386
  %v1403 = vunpack.c.l.b16 %v1387
  %v1404 = vunpack.c.l.b16 %v1388
  %v1405 = vunpack.c.l.b16 %v1389
  %v1406 = vunpack.c.l.b16 %v1390
  %v1407 = vunpack.c.l.b16 %v1391
  %v1408 = vunpack.c.l.b16 %v1392
  %v1409 = vpack.c.b16 %v1402, %v1401
  %v1410 = vpack.c.b16 %v1404, %v1403
  %v1411 = vpack.c.b16 %v1406, %v1405
  %v1412 = vpack.c.b16 %v1408, %v1407
  %v1418 = vsel %vm248, %v1383, 0
  %1420 = vmatprep.subr.bf16.mxu0 0
  %1421 = vmatpush1.bf16.msra.mxu0 %v1409
  %1422 = vmatprep.subr.bf16.mxu0 0
  %1423 = vmatpush1.bf16.msra.mxu0 %v1410
  %1424 = vmatprep.subr.bf16.mxu0 0
  %1425 = vmatpush1.bf16.msra.mxu0 %v1411
  %1426 = vmatprep.subr.bf16.mxu0 0
  %1427 = vmatpush1.bf16.msra.mxu0 %v1412
  %1428 = vmatprep.subr.bf16.mxu0 0
  %1429 = vmatpush1.bf16.msra.mxu0 0
  %1430 = vmatprep.subr.bf16.mxu0 0
  %1431 = vmatpush1.bf16.msra.mxu0 0
  %1432 = vmatprep.subr.bf16.mxu0 0
  %1433 = vmatpush1.bf16.msra.mxu0 0
  %1434 = vmatprep.subr.bf16.mxu0 0
  %1435 = vmatpush1.bf16.msra.mxu0 0
  %1436 = vmatprep.subr.bf16.mxu0 0
  %1437 = vmatpush1.bf16.msra.mxu0 0
  %1438 = vmatprep.subr.bf16.mxu0 0
  %1439 = vmatpush1.bf16.msra.mxu0 0
  %1440 = vmatprep.subr.bf16.mxu0 0
  %1441 = vmatpush1.bf16.msra.mxu0 0
  %1442 = vmatprep.subr.bf16.mxu0 0
  %1443 = vmatpush1.bf16.msra.mxu0 0
  %1444 = vmatprep.subr.bf16.mxu0 0
  %1445 = vmatpush1.bf16.msra.mxu0 0
  %1446 = vmatprep.subr.bf16.mxu0 0
  %1447 = vmatpush1.bf16.msra.mxu0 0
  %1448 = vmatprep.subr.bf16.mxu0 0
  %1449 = vmatpush1.bf16.msra.mxu0 0
  %1450 = vmatprep.subr.bf16.mxu0 0
  %1451 = vmatpush1.bf16.msra.mxu0 0
  %1452 = vmatprep.mubr.bf16.mxu0 0
  %1453 = vmatmul.mubr.bf16.gmra.mrb[0].mxu0 %v1418
  %v1454 = vpop.f32.mrb[0].mxu0
  %v1455 = vadd.f32 0.0, %v1454
  %v1456 = vpop.f32.mrb[0].mxu0
  %v1457 = vpop.f32.mrb[0].mxu0
  %v1458 = vadd.f32 0.0, %v1457
  %v1459 = vpop.f32.mrb[0].mxu0
  %1460 = vdwg.mxu0
  %v1461 = vadd.f32 %v1375, %v1455
  %v1462 = vadd.f32 %v1378, %v1458
  %v1463 = vld [vmem:[%s1219] sm:$0xff]
  %v1464 = vld [vmem:[%s1219 + $0x8] sm:$0xff]
  %v1465 = vpack.c.bf16 %v1464, %v1463
  %v1466 = vld [vmem:[%s1219 + $0x1] sm:$0xff]
  %v1467 = vld [vmem:[%s1219 + $0x9] sm:$0xff]
  %v1468 = vpack.c.bf16 %v1467, %v1466
  %v1470 = vsel %vm248, %v1468, 0
  %1472 = vmatprep.subr.bf16.mxu0 0
  %1473 = vmatpush1.bf16.msra.mxu0 %v1261
  %1474 = vmatprep.subr.bf16.mxu0 0
  %1475 = vmatpush1.bf16.msra.mxu0 %v1262
  %1476 = vmatprep.subr.bf16.mxu0 0
  %1477 = vmatpush1.bf16.msra.mxu0 %v1263
  %1478 = vmatprep.subr.bf16.mxu0 0
  %1479 = vmatpush1.bf16.msra.mxu0 %v1264
  %1480 = vmatprep.subr.bf16.mxu0 0
  %1481 = vmatpush1.bf16.msra.mxu0 0
  %1482 = vmatprep.subr.bf16.mxu0 0
  %1483 = vmatpush1.bf16.msra.mxu0 0
  %1484 = vmatprep.subr.bf16.mxu0 0
  %1485 = vmatpush1.bf16.msra.mxu0 0
  %1486 = vmatprep.subr.bf16.mxu0 0
  %1487 = vmatpush1.bf16.msra.mxu0 0
  %1488 = vmatprep.subr.bf16.mxu0 0
  %1489 = vmatpush1.bf16.msra.mxu0 0
  %1490 = vmatprep.subr.bf16.mxu0 0
  %1491 = vmatpush1.bf16.msra.mxu0 0
  %1492 = vmatprep.subr.bf16.mxu0 0
  %1493 = vmatpush1.bf16.msra.mxu0 0
  %1494 = vmatprep.subr.bf16.mxu0 0
  %1495 = vmatpush1.bf16.msra.mxu0 0
  %1496 = vmatprep.subr.bf16.mxu0 0
  %1497 = vmatpush1.bf16.msra.mxu0 0
  %1498 = vmatprep.subr.bf16.mxu0 0
  %1499 = vmatpush1.bf16.msra.mxu0 0
  %1500 = vmatprep.subr.bf16.mxu0 0
  %1501 = vmatpush1.bf16.msra.mxu0 0
  %1502 = vmatprep.subr.bf16.mxu0 0
  %1503 = vmatpush1.bf16.msra.mxu0 0
  %1504 = vmatprep.mubr.bf16.mxu0 0
  %1505 = vmatmul.mubr.bf16.gmra.mrb[0].mxu0 %v1470
  %v1506 = vpop.f32.mrb[0].mxu0
  %v1507 = vadd.f32 0.0, %v1506
  %v1508 = vpop.f32.mrb[0].mxu0
  %v1509 = vpop.f32.mrb[0].mxu0
  %v1510 = vadd.f32 0.0, %v1509
  %v1511 = vpop.f32.mrb[0].mxu0
  %1512 = vdwg.mxu0
  %v1514 = vsel %vm248, %v1465, 0
  %1516 = vmatprep.subr.bf16.mxu0 0
  %1517 = vmatpush1.bf16.msra.mxu0 %v1329
  %1518 = vmatprep.subr.bf16.mxu0 0
  %1519 = vmatpush1.bf16.msra.mxu0 %v1330
  %1520 = vmatprep.subr.bf16.mxu0 0
  %1521 = vmatpush1.bf16.msra.mxu0 %v1331
  %1522 = vmatprep.subr.bf16.mxu0 0
  %1523 = vmatpush1.bf16.msra.mxu0 %v1332
  %1524 = vmatprep.subr.bf16.mxu0 0
  %1525 = vmatpush1.bf16.msra.mxu0 0
  %1526 = vmatprep.subr.bf16.mxu0 0
  %1527 = vmatpush1.bf16.msra.mxu0 0
  %1528 = vmatprep.subr.bf16.mxu0 0
  %1529 = vmatpush1.bf16.msra.mxu0 0
  %1530 = vmatprep.subr.bf16.mxu0 0
  %1531 = vmatpush1.bf16.msra.mxu0 0
  %1532 = vmatprep.subr.bf16.mxu0 0
  %1533 = vmatpush1.bf16.msra.mxu0 0
  %1534 = vmatprep.subr.bf16.mxu0 0
  %1535 = vmatpush1.bf16.msra.mxu0 0
  %1536 = vmatprep.subr.bf16.mxu0 0
  %1537 = vmatpush1.bf16.msra.mxu0 0
  %1538 = vmatprep.subr.bf16.mxu0 0
  %1539 = vmatpush1.bf16.msra.mxu0 0
  %1540 = vmatprep.subr.bf16.mxu0 0
  %1541 = vmatpush1.bf16.msra.mxu0 0
  %1542 = vmatprep.subr.bf16.mxu0 0
  %1543 = vmatpush1.bf16.msra.mxu0 0
  %1544 = vmatprep.subr.bf16.mxu0 0
  %1545 = vmatpush1.bf16.msra.mxu0 0
  %1546 = vmatprep.subr.bf16.mxu0 0
  %1547 = vmatpush1.bf16.msra.mxu0 0
  %1548 = vmatprep.mubr.bf16.mxu0 0
  %1549 = vmatmul.mubr.bf16.gmra.mrb[0].mxu0 %v1514
  %v1550 = vpop.f32.mrb[0].mxu0
  %v1551 = vadd.f32 %v1507, %v1550
  %v1552 = vpop.f32.mrb[0].mxu0
  %v1553 = vpop.f32.mrb[0].mxu0
  %v1554 = vadd.f32 %v1510, %v1553
  %v1555 = vpop.f32.mrb[0].mxu0
  %1556 = vdwg.mxu0
  %v1557 = vld [vmem:[%s1219 + $0x2] sm:$0xff]
  %v1558 = vld [vmem:[%s1219 + $0xa] sm:$0xff]
  %v1559 = vpack.c.bf16 %v1558, %v1557
  %v1561 = vsel %vm248, %v1559, 0
  %1563 = vmatprep.subr.bf16.mxu0 0
  %1564 = vmatpush1.bf16.msra.mxu0 %v1409
  %1565 = vmatprep.subr.bf16.mxu0 0
  %1566 = vmatpush1.bf16.msra.mxu0 %v1410
  %1567 = vmatprep.subr.bf16.mxu0 0
  %1568 = vmatpush1.bf16.msra.mxu0 %v1411
  %1569 = vmatprep.subr.bf16.mxu0 0
  %1570 = vmatpush1.bf16.msra.mxu0 %v1412
  %1571 = vmatprep.subr.bf16.mxu0 0
  %1572 = vmatpush1.bf16.msra.mxu0 0
  %1573 = vmatprep.subr.bf16.mxu0 0
  %1574 = vmatpush1.bf16.msra.mxu0 0
  %1575 = vmatprep.subr.bf16.mxu0 0
  %1576 = vmatpush1.bf16.msra.mxu0 0
  %1577 = vmatprep.subr.bf16.mxu0 0
  %1578 = vmatpush1.bf16.msra.mxu0 0
  %1579 = vmatprep.subr.bf16.mxu0 0
  %1580 = vmatpush1.bf16.msra.mxu0 0
  %1581 = vmatprep.subr.bf16.mxu0 0
  %1582 = vmatpush1.bf16.msra.mxu0 0
  %1583 = vmatprep.subr.bf16.mxu0 0
  %1584 = vmatpush1.bf16.msra.mxu0 0
  %1585 = vmatprep.subr.bf16.mxu0 0
  %1586 = vmatpush1.bf16.msra.mxu0 0
  %1587 = vmatprep.subr.bf16.mxu0 0
  %1588 = vmatpush1.bf16.msra.mxu0 0
  %1589 = vmatprep.subr.bf16.mxu0 0
  %1590 = vmatpush1.bf16.msra.mxu0 0
  %1591 = vmatprep.subr.bf16.mxu0 0
  %1592 = vmatpush1.bf16.msra.mxu0 0
  %1593 = vmatprep.subr.bf16.mxu0 0
  %1594 = vmatpush1.bf16.msra.mxu0 0
  %1595 = vmatprep.mubr.bf16.mxu0 0
  %1596 = vmatmul.mubr.bf16.gmra.mrb[0].mxu0 %v1561
  %v1597 = vpop.f32.mrb[0].mxu0
  %v1598 = vadd.f32 0.0, %v1597
  %v1599 = vpop.f32.mrb[0].mxu0
  %v1600 = vpop.f32.mrb[0].mxu0
  %v1601 = vadd.f32 0.0, %v1600
  %v1602 = vpop.f32.mrb[0].mxu0
  %1603 = vdwg.mxu0
  %v1604 = vadd.f32 %v1551, %v1598
  %v1605 = vadd.f32 %v1554, %v1601
  %v1606 = vsel %vm248, %v1461, 0.0
  %v1607 = vsel %vm248, %v1462, 0.0
  %v1608 = vadd.f32 %v1606, %v1607
  %v1609 = vrot.slane %v1608, 4
  %v1610 = vadd.f32 %v1608, %v1609
  %v1611 = vrot.slane %v1610, 2
  %v1612 = vadd.f32 %v1610, %v1611
  %v1613 = vrot.slane %v1612, 1
  %v1614 = vadd.f32 %v1612, %v1613
  %v1615 = vadd.f32 %v1614, 0.0
  %v1616 = vsel %vm248, %v1604, 0.0
  %v1617 = vsel %vm248, %v1605, 0.0
  %v1618 = vadd.f32 %v1616, %v1617
  %v1619 = vrot.slane %v1618, 4
  %v1620 = vadd.f32 %v1618, %v1619
  %v1621 = vrot.slane %v1620, 2
  %v1622 = vadd.f32 %v1620, %v1621
  %v1623 = vrot.slane %v1622, 1
  %v1624 = vadd.f32 %v1622, %v1623
  %v1625 = vadd.f32 %v1615, %v1624
  %v1626 = vld [vmem:[%s9] sm:$0xff]
  %v1627 = vld [vmem:[%s9 + $0x8] sm:$0xff]
  %v1628 = vld [vmem:[%s9 + $0x10] sm:$0xff]
  %v1629 = vld [vmem:[%s9 + $0x18] sm:$0xff]
  %v1630 = vld [vmem:[%s9 + $0x20] sm:$0xff]
  %v1631 = vld [vmem:[%s9 + $0x28] sm:$0xff]
  %v1632 = vld [vmem:[%s9 + $0x30] sm:$0xff]
  %v1633 = vld [vmem:[%s9 + $0x38] sm:$0xff]
  %v1635 = vsel %vm248, %v1625, 0
  %1637 = vmatprep.subr.mxu0 0.0
  %1638 = vmatpush1.msra.mxu0 %v1626
  %1639 = vmatprep.subr.mxu0 0.0
  %1640 = vmatpush1.msra.mxu0 %v1627
  %1641 = vmatprep.subr.mxu0 0.0
  %1642 = vmatpush1.msra.mxu0 %v1628
  %1643 = vmatprep.subr.mxu0 0.0
  %1644 = vmatpush1.msra.mxu0 %v1629
  %1645 = vmatprep.subr.mxu0 0.0
  %1646 = vmatpush1.msra.mxu0 %v1630
  %1647 = vmatprep.subr.mxu0 0.0
  %1648 = vmatpush1.msra.mxu0 %v1631
  %1649 = vmatprep.subr.mxu0 0.0
  %1650 = vmatpush1.msra.mxu0 %v1632
  %1651 = vmatprep.subr.mxu0 0.0
  %1652 = vmatpush1.msra.mxu0 %v1633
  %1653 = vmatprep.subr.mxu0 0.0
  %1654 = vmatpush1.msra.mxu0 0.0
  %1655 = vmatprep.subr.mxu0 0.0
  %1656 = vmatpush1.msra.mxu0 0.0
  %1657 = vmatprep.subr.mxu0 0.0
  %1658 = vmatpush1.msra.mxu0 0.0
  %1659 = vmatprep.subr.mxu0 0.0
  %1660 = vmatpush1.msra.mxu0 0.0
  %1661 = vmatprep.subr.mxu0 0.0
  %1662 = vmatpush1.msra.mxu0 0.0
  %1663 = vmatprep.subr.mxu0 0.0
  %1664 = vmatpush1.msra.mxu0 0.0
  %1665 = vmatprep.subr.mxu0 0.0
  %1666 = vmatpush1.msra.mxu0 0.0
  %1667 = vmatprep.subr.mxu0 0.0
  %1668 = vmatpush1.msra.mxu0 0.0
  %1669 = vmatprep.subr.mxu0 0.0
  %1670 = vmatpush1.msra.mxu0 0.0
  %1671 = vmatprep.subr.mxu0 0.0
  %1672 = vmatpush1.msra.mxu0 0.0
  %1673 = vmatprep.subr.mxu0 0.0
  %1674 = vmatpush1.msra.mxu0 0.0
  %1675 = vmatprep.subr.mxu0 0.0
  %1676 = vmatpush1.msra.mxu0 0.0
  %1677 = vmatprep.subr.mxu0 0.0
  %1678 = vmatpush1.msra.mxu0 0.0
  %1679 = vmatprep.subr.mxu0 0.0
  %1680 = vmatpush1.msra.mxu0 0.0
  %1681 = vmatprep.subr.mxu0 0.0
  %1682 = vmatpush1.msra.mxu0 0.0
  %1683 = vmatprep.subr.mxu0 0.0
  %1684 = vmatpush1.msra.mxu0 0.0
  %1685 = vmatprep.subr.mxu0 0.0
  %1686 = vmatpush1.msra.mxu0 0.0
  %1687 = vmatprep.subr.mxu0 0.0
  %1688 = vmatpush1.msra.mxu0 0.0
  %1689 = vmatprep.subr.mxu0 0.0
  %1690 = vmatpush1.msra.mxu0 0.0
  %1691 = vmatprep.subr.mxu0 0.0
  %1692 = vmatpush1.msra.mxu0 0.0
  %1693 = vmatprep.subr.mxu0 0.0
  %1694 = vmatpush1.msra.mxu0 0.0
  %1695 = vmatprep.subr.mxu0 0.0
  %1696 = vmatpush1.msra.mxu0 0.0
  %1697 = vmatprep.subr.mxu0 0.0
  %1698 = vmatpush1.msra.mxu0 0.0
  %1699 = vmatprep.subr.mxu0 0.0
  %1700 = vmatpush1.msra.mxu0 0.0
  %1701 = vmatprep.mubr.f32.mxu0 0.0
  %1702 = vmatmul.mubr.f32.gmra.mrb[0].mxu0 %v1635
  %v1703 = vpop.f32.mrb[0].mxu0
  %v1704 = vadd.f32 0.0, %v1703
  %v1705 = vpop.f32.mrb[0].mxu0
  %1706 = vdwg.mxu0
  %v1707 = vmul.f32 %v1704, 0.001953125
  %v1708 = vlaneseq
  %v1709 = vshrl.u32 %v1708, 7
  %v1710 = vsub.s32 0, %v1709
  %v1711 = vrot.slane %v1707, %v1710
  %v1712 = vsub.f32 %v1461, %v1711
  %v1713 = vsub.f32 %v1462, %v1711
  %v1714 = vmul.f32 %v1712, %v1712
  %v1715 = vmul.f32 %v1713, %v1713
  %v1716 = vsel %vm248, %v1714, 0.0
  %v1717 = vsel %vm248, %v1715, 0.0
  %v1718 = vadd.f32 %v1716, %v1717
  %v1719 = vrot.slane %v1718, 4
  %v1720 = vadd.f32 %v1718, %v1719
  %v1721 = vrot.slane %v1720, 2
  %v1722 = vadd.f32 %v1720, %v1721
  %v1723 = vrot.slane %v1722, 1
  %v1724 = vadd.f32 %v1722, %v1723
  %v1725 = vadd.f32 %v1724, 0.0
  %v1726 = vsub.f32 %v1604, %v1711
  %v1727 = vsub.f32 %v1605, %v1711
  %v1728 = vmul.f32 %v1726, %v1726
  %v1729 = vmul.f32 %v1727, %v1727
  %v1730 = vsel %vm248, %v1728, 0.0
  %v1731 = vsel %vm248, %v1729, 0.0
  %v1732 = vadd.f32 %v1730, %v1731
  %v1733 = vrot.slane %v1732, 4
  %v1734 = vadd.f32 %v1732, %v1733
  %v1735 = vrot.slane %v1734, 2
  %v1736 = vadd.f32 %v1734, %v1735
  %v1737 = vrot.slane %v1736, 1
  %v1738 = vadd.f32 %v1736, %v1737
  %v1739 = vadd.f32 %v1725, %v1738
  %v1741 = vsel %vm248, %v1739, 0
  %1743 = vmatprep.subr.mxu0 0.0
  %1744 = vmatpush1.msra.mxu0 %v1626
  %1745 = vmatprep.subr.mxu0 0.0
  %1746 = vmatpush1.msra.mxu0 %v1627
  %1747 = vmatprep.subr.mxu0 0.0
  %1748 = vmatpush1.msra.mxu0 %v1628
  %1749 = vmatprep.subr.mxu0 0.0
  %1750 = vmatpush1.msra.mxu0 %v1629
  %1751 = vmatprep.subr.mxu0 0.0
  %1752 = vmatpush1.msra.mxu0 %v1630
  %1753 = vmatprep.subr.mxu0 0.0
  %1754 = vmatpush1.msra.mxu0 %v1631
  %1755 = vmatprep.subr.mxu0 0.0
  %1756 = vmatpush1.msra.mxu0 %v1632
  %1757 = vmatprep.subr.mxu0 0.0
  %1758 = vmatpush1.msra.mxu0 %v1633
  %1759 = vmatprep.subr.mxu0 0.0
  %1760 = vmatpush1.msra.mxu0 0.0
  %1761 = vmatprep.subr.mxu0 0.0
  %1762 = vmatpush1.msra.mxu0 0.0
  %1763 = vmatprep.subr.mxu0 0.0
  %1764 = vmatpush1.msra.mxu0 0.0
  %1765 = vmatprep.subr.mxu0 0.0
  %1766 = vmatpush1.msra.mxu0 0.0
  %1767 = vmatprep.subr.mxu0 0.0
  %1768 = vmatpush1.msra.mxu0 0.0
  %1769 = vmatprep.subr.mxu0 0.0
  %1770 = vmatpush1.msra.mxu0 0.0
  %1771 = vmatprep.subr.mxu0 0.0
  %1772 = vmatpush1.msra.mxu0 0.0
  %1773 = vmatprep.subr.mxu0 0.0
  %1774 = vmatpush1.msra.mxu0 0.0
  %1775 = vmatprep.subr.mxu0 0.0
  %1776 = vmatpush1.msra.mxu0 0.0
  %1777 = vmatprep.subr.mxu0 0.0
  %1778 = vmatpush1.msra.mxu0 0.0
  %1779 = vmatprep.subr.mxu0 0.0
  %1780 = vmatpush1.msra.mxu0 0.0
  %1781 = vmatprep.subr.mxu0 0.0
  %1782 = vmatpush1.msra.mxu0 0.0
  %1783 = vmatprep.subr.mxu0 0.0
  %1784 = vmatpush1.msra.mxu0 0.0
  %1785 = vmatprep.subr.mxu0 0.0
  %1786 = vmatpush1.msra.mxu0 0.0
  %1787 = vmatprep.subr.mxu0 0.0
  %1788 = vmatpush1.msra.mxu0 0.0
  %1789 = vmatprep.subr.mxu0 0.0
  %1790 = vmatpush1.msra.mxu0 0.0
  %1791 = vmatprep.subr.mxu0 0.0
  %1792 = vmatpush1.msra.mxu0 0.0
  %1793 = vmatprep.subr.mxu0 0.0
  %1794 = vmatpush1.msra.mxu0 0.0
  %1795 = vmatprep.subr.mxu0 0.0
  %1796 = vmatpush1.msra.mxu0 0.0
  %1797 = vmatprep.subr.mxu0 0.0
  %1798 = vmatpush1.msra.mxu0 0.0
  %1799 = vmatprep.subr.mxu0 0.0
  %1800 = vmatpush1.msra.mxu0 0.0
  %1801 = vmatprep.subr.mxu0 0.0
  %1802 = vmatpush1.msra.mxu0 0.0
  %1803 = vmatprep.subr.mxu0 0.0
  %1804 = vmatpush1.msra.mxu0 0.0
  %1805 = vmatprep.subr.mxu0 0.0
  %1806 = vmatpush1.msra.mxu0 0.0
  %1807 = vmatprep.mubr.f32.mxu0 0.0
  %1808 = vmatmul.mubr.f32.gmra.mrb[0].mxu0 %v1741
  %v1809 = vpop.f32.mrb[0].mxu0
  %v1810 = vadd.f32 0.0, %v1809
  %v1811 = vpop.f32.mrb[0].mxu0
  %1812 = vdwg.mxu0
  %v1813 = vmul.f32 %v1810, 0.001953125
  %v1814 = vadd.f32 %v1813, 1e-05
  %v1815 = vrsqrt.pop %v1814
  %v1816 = vld [vmem:[%s10] sm:$0x1]
  %v1817 = vmul.f32 %v1815, %v1816
  %v1818 = vlaneseq
  %v1819 = vshrl.u32 %v1818, 7
  %v1820 = vsub.s32 0, %v1819
  %v1821 = vrot.slane %v1817, %v1820
  %v1822 = vmul.f32 %v1712, %v1821
  %v1823 = vmul.f32 %v1713, %v1821
  %v1824 = vld [vmem:[%s11] sm:$0x1]
  %v1826 = vlaneseq
  %v1827 = vshrl.u32 %v1826, 7
  %v1828 = vsub.s32 0, %v1827
  %v1829 = vrot.slane %v1824, %v1828
  %v1831 = vadd.f32 %v1822, %v1829
  %v1832 = vadd.f32 %v1823, %v1829
  %v1833 = vmax.f32 %v1831, 0.0
  %v1834 = vmax.f32 %v1832, 0.0
  %v1835 = vmul.f32 %v1726, %v1821
  %v1836 = vmul.f32 %v1727, %v1821
  %v1837 = vadd.f32 %v1835, %v1829
  %v1838 = vadd.f32 %v1836, %v1829
  %v1839 = vmax.f32 %v1837, 0.0
  %v1840 = vmax.f32 %v1838, 0.0
  %1841 = vst.msk [vmem:[%s12] sm:$0xff] %vm248, %v1833
  %1842 = vst.msk [vmem:[%s12 + $0x8] sm:$0xff] %vm248, %v1834
  %s1843 = scalar_lea.vmem %s12, 16
  %1844 = vst.msk [vmem:[%s1843] sm:$0xff] %vm248, %v1839
  %1845 = vst.msk [vmem:[%s1843 + $0x8] sm:$0xff] %vm248, %v1840
  // Predicated region
  $region50: #{up_forward.1} parent=0 // pred_check
    _
  $region51: #{up_forward.1} parent=0 // pred_check_branch
    %1847 = sbr.rel (0) target = $region53
  $region52: #{up_forward.1} parent=0 // pred_region
    _
  $region53: #{up_forward.1} parent=0 // pred_fallthru
    _
  // Predicated region
  $region54: #{up_forward.1} parent=0 // pred_check
    _
  $region55: #{up_forward.1} parent=0 // pred_check_branch
    %1849 = sbr.rel (0) target = $region57
  $region56: #{up_forward.1} parent=0 // pred_region
    _
  $region57: #{up_forward.1} parent=0 // pred_fallthru
    _

</llo_original>
